<compile_context>
chip_gen: v5e
topology: v5e:2x2
jax: 0.10.0
libtpu: 0.0.40
codegen_flags: <defaults>
</compile_context>

<pallas_src>
import functools
import math

import jax
import jax.numpy as jnp
from jax import lax
from jax.experimental import pallas as pl
from jax.experimental.pallas import tpu as pltpu


def _round_up(x, m):
    return ((x + m - 1) // m) * m


# ---------------------------------------------------------------------------
# Counter-based PRNG helpers (pure jnp -> lowers on Mosaic and in interpret).
# ---------------------------------------------------------------------------
def _hash_u32(x):
    """lowbias32-style integer hash (good avalanche, only mul/shift/xor)."""
    x = x ^ (x >> 16)
    x = x * jnp.uint32(0x7FEB352D)
    x = x ^ (x >> 15)
    x = x * jnp.uint32(0x846CA68B)
    x = x ^ (x >> 16)
    return x


def _bits_to_unit(bits):
    """uint32 bits -> f32 uniform in [0, 1) via the mantissa trick."""
    mant = (bits >> jnp.uint32(9)) | jnp.uint32(0x3F800000)
    return lax.bitcast_convert_type(mant, jnp.float32) - jnp.float32(1.0)


# ---------------------------------------------------------------------------
# Fused LEMODE2 kernel: `t_blk` timesteps x data-dependent substeps per grid
# step, for one batch block.
# ---------------------------------------------------------------------------
def _lemode2_kernel(div_ref, seed_ref,               # scalar prefetch (SMEM)
                    inp_ref, delta_ref,              # (t_blk, bblk, ...) blocks
                    w_big_ref, b_big_ref, w_dt_ref, b_dt_ref,
                    w_z_ref, b_z_ref, w_cls_ref, b_cls_ref,
                    w_st_ref, b_st_ref,              # VMEM-resident weights
                    out_ref,                         # (t_blk, bblk, p) output
                    y_scr, z_scr, xy_scr,            # recurrent state (VMEM)
                    *, hp, p, kn, t_blk, ycoeff, zcoeff):
    f32 = jnp.float32
    bf16 = jnp.bfloat16
    b = pl.program_id(0)
    tb = pl.program_id(1)
    bblk = y_scr.shape[0]

    @pl.when(tb == 0)
    def _init():
        y_scr[...] = jnp.zeros_like(y_scr)
        z_scr[...] = jnp.zeros_like(z_scr)

    seed_u = seed_ref[0].astype(jnp.uint32)

    # Loop-invariant per-element noise counters (hoisted out of every loop).
    # Use the GLOBAL batch row so the stream is independent of batch tiling.
    half = kn // 2
    row = lax.broadcasted_iota(jnp.int32, (bblk, half), 0) + b * bblk
    col = lax.broadcasted_iota(jnp.int32, (bblk, half), 1)
    idx_h = (row * half + col).astype(jnp.uint32) * jnp.uint32(0x9E3779B9)

    def timestep(tl, carry_dummy):
        t = tb * t_blk + tl
        x0 = inp_ref[tl]                              # (bblk, p)  f32
        delta = delta_ref[tl]                         # (bblk, 1)  f32

        # transform_dt (Linear(1,2)) and all (bblk,1)->(bblk,hp) broadcasts are
        # loop-invariant within a timestep: hoist them out of the substep loop.
        tdt = delta * w_dt_ref[...] + b_dt_ref[...]   # (bblk, 2)
        sig1 = jnp.broadcast_to(jax.nn.sigmoid(tdt[:, 0:1]), (bblk, hp))
        sig2 = jnp.broadcast_to(jax.nn.sigmoid(tdt[:, 1:2]), (bblk, hp))
        dy = jnp.broadcast_to(jnp.float32(ycoeff) * delta, (bblk, hp))
        dz = jnp.broadcast_to(jnp.float32(zcoeff) * delta, (bblk, hp))

        kt = _hash_u32(seed_u ^ (t.astype(jnp.uint32) * jnp.uint32(0x9E3779B9)))

        # Seed the persistent [x | y] matmul-LHS scratch for this timestep.
        xy_scr[:, 0:p] = x0.astype(bf16)
        xy_scr[:, p:p + hp] = y_scr[...].astype(bf16)

        def substep(i, carry):
            y, z = carry

            # ---- stochastic path: independent of (x, y, z); overlaps the
            #      recurrent chain (EUP Box-Muller + w_st MXU pass hidden). ----
            ks = _hash_u32(kt ^ ((i.astype(jnp.uint32) + jnp.uint32(1))
                                 * jnp.uint32(0x85EBCA6B)))
            b1 = _hash_u32(idx_h + ks)
            b2 = _hash_u32(b1 ^ jnp.uint32(0x68BC21EB))
            u1 = jnp.float32(1.0) - _bits_to_unit(b1)           # (0, 1]
            u2 = _bits_to_unit(b2)                              # [0, 1)
            r = jnp.sqrt(jnp.float32(-2.0) * jnp.log(u1))
            th = jnp.float32(2.0 * math.pi) * u2
            noise = jnp.concatenate([r * jnp.cos(th), r * jnp.sin(th)], axis=1)
            st = jnp.tanh(jnp.dot(noise.astype(bf16), w_st_ref[...],
                                  preferred_element_type=f32) + b_st_ref[...])

            # ---- recurrent chain: 3 serial MXU passes (gate, w_z, w_cls) ----
            g = jnp.dot(xy_scr[...], w_big_ref[...],
                        preferred_element_type=f32) + b_big_ref[...]
            ms_bar = sig1 * jax.nn.sigmoid(g[:, 0 * hp:1 * hp])   # i_dt1+h_dt1
            ms = sig2 * jax.nn.sigmoid(g[:, 1 * hp:2 * hp])       # i_dt2+h_dt2
            z_new = (1.0 - ms) * z + ms * jnp.tanh(g[:, 3 * hp:4 * hp])
            tz = jnp.dot(z_new.astype(bf16), w_z_ref[...],
                         preferred_element_type=f32) + b_z_ref[...]
            y_new = (1.0 - ms_bar) * y + ms_bar * jnp.tanh(tz + g[:, 2 * hp:3 * hp])

            # Classifier of the PRE-noise hidden state feeds the next substep.
            x_next = jnp.dot(y_new.astype(bf16), w_cls_ref[...],
                             preferred_element_type=f32) + b_cls_ref[...]

            y_out = y_new + dy * st[:, 0:hp]
            z_out = z_new + dz * st[:, hp:2 * hp]

            xy_scr[:, 0:p] = x_next.astype(bf16)
            xy_scr[:, p:p + hp] = y_out.astype(bf16)
            return (y_out, z_out)

        nsub = div_ref[t]                               # dynamic trip count
        y_f, z_f = lax.fori_loop(0, nsub, substep, (y_scr[...], z_scr[...]))
        y_scr[...] = y_f
        z_scr[...] = z_f
        # Per-timestep classifier of the post-noise hidden state (== the
        # reference's classifier(stack(y_hidds)) row for this t).
        out_ref[tl] = (jnp.dot(y_f.astype(bf16), w_cls_ref[...],
                               preferred_element_type=f32) + b_cls_ref[...]
                       ).astype(out_ref.dtype)
        return carry_dummy

    lax.fori_loop(0, t_blk, timestep, 0)


# ---------------------------------------------------------------------------
# Host wrapper (jitted, no host sync).
# ---------------------------------------------------------------------------
@functools.partial(jax.jit,
                   static_argnames=("nout", "ycoeff", "zcoeff", "limit",
                                    "batch_block", "time_block"))
def lemode2_forward(inp, dt, seed, pp, *, nout, ycoeff=1.0, zcoeff=1.0,
                    limit=0.1, batch_block=None, time_block=8):
    """inp: (T, B, ninp); dt: (T, B, 1); seed: int32. Returns (T, B, nout)."""
    f32 = jnp.float32
    T, B, ninp = inp.shape
    hp = pp["w_z"].shape[0]          # padded hidden width    (multiple of 128)
    p = pp["w_cls"].shape[1]         # padded ninp/nout width (multiple of 128)
    kn = pp["w_st"].shape[0]         # padded noise width     (multiple of 128)

    # NOTE: when any per-timestep divider > 1 the classifier output (nout) is
    # fed back into the cell's ninp slot -- like the PyTorch reference, this
    # is only meaningful when nout == ninp.

    # Per-timestep substep counts, computed on device (no blocking device_get).
    dividers = jnp.maximum(
        jnp.int32(1),
        jnp.ceil(jnp.max(dt.astype(f32), axis=(1, 2)) / jnp.float32(limit)
                 ).astype(jnp.int32))
    delta = dt.astype(f32) / dividers[:, None, None].astype(f32)

    Bp = _round_up(B, 8)
    if batch_block is None:
        # Review: no batch halving on single-TC chips; use the full padded
        # batch as the MXU M dim (cap only when the batch is very large).
        bblk = Bp
        if Bp > 512:
            for cand in (512, 256, 128, 64, 32, 16, 8):
                if Bp % cand == 0:
                    bblk = cand
                    break
    else:
        bblk = int(batch_block)
    nb = Bp // bblk

    # Time-axis blocking: amortize per-grid-step overhead over several steps.
    t_blk = max(1, min(int(time_block), T))
    Tp = _round_up(T, t_blk)
    nt = Tp // t_blk

    inp_p = jnp.zeros((Tp, Bp, p), f32).at[:T, :B, :ninp].set(inp.astype(f32))
    delta_p = jnp.zeros((Tp, Bp, 1), f32).at[:T, :B, :].set(delta)
    div_p = jnp.zeros((Tp,), jnp.int32).at[:T].set(dividers)   # pads run 0 substeps
    seed_arr = jnp.asarray(seed, jnp.int32).reshape((1,))

    weights = (pp["w_big"], pp["b_big"], pp["w_dt"], pp["b_dt"],
               pp["w_z"], pp["b_z"], pp["w_cls"], pp["b_cls"],
               pp["w_st"], pp["b_st"])

    const = lambda b, t, div, seed: (0, 0)       # weights: one VMEM-resident block
    in_specs = [
        pl.BlockSpec((t_blk, bblk, p), lambda b, t, div, seed: (t, b, 0)),   # inp
        pl.BlockSpec((t_blk, bblk, 1), lambda b, t, div, seed: (t, b, 0)),   # delta
    ] + [pl.BlockSpec(w.shape, const) for w in weights]
    out_specs = pl.BlockSpec((t_blk, bblk, p), lambda b, t, div, seed: (t, b, 0))

    grid_spec = pltpu.PrefetchScalarGridSpec(
        num_scalar_prefetch=2,
        grid=(nb, nt),
        in_specs=in_specs,
        out_specs=out_specs,
        scratch_shapes=[pltpu.VMEM((bblk, hp), f32),             # y state
                        pltpu.VMEM((bblk, hp), f32),             # z state
                        pltpu.VMEM((bblk, p + hp), jnp.bfloat16)],  # [x | y] LHS
    )

    # VMEM budget: weights + in/out blocks are double-buffered by the default
    # pipeline; cap derived from the chip's physical VMEM when queryable
    # (v7x-safe 40 MiB fallback).
    weight_bytes = sum(int(w.size) * w.dtype.itemsize for w in weights)
    block_bytes = 4 * t_blk * bblk * (2 * p + 1)
    scratch_bytes = 2 * 4 * bblk * hp + 2 * bblk * (p + hp)
    need = 2 * weight_bytes + 2 * block_bytes + scratch_bytes
    vmem_cap = 40 << 20
    try:
        info_fn = getattr(pltpu, "get_tpu_info", None)
        if info_fn is not None:
            vmem_cap = max(vmem_cap,
                           int(info_fn().vmem_capacity_bytes) * 5 // 8)
    except Exception:
        pass
    vmem_limit = int(min(max(2 * need + (1 << 20), 16 << 20), vmem_cap))

    est_sub = 2 * Tp * nb            # advisory only (real count is data-dependent)
    flops = 2 * bblk * ((p + hp) * 4 * hp + hp * hp + 2 * hp * p
                        + kn * 2 * hp) * est_sub
    trans = bblk * (6 * hp + 2 * kn) * est_sub
    cost = pl.CostEstimate(
        flops=int(flops), transcendentals=int(trans),
        bytes_accessed=int(weight_bytes + inp_p.size * 4 + delta_p.size * 4
                           + Tp * Bp * p * 4))

    kernel = functools.partial(_lemode2_kernel, hp=hp, p=p, kn=kn, t_blk=t_blk,
                               ycoeff=float(ycoeff), zcoeff=float(zcoeff))

    out_p = pl.pallas_call(
        kernel,
        out_shape=jax.ShapeDtypeStruct((Tp, Bp, p), f32),
        grid_spec=grid_spec,
        compiler_params=pltpu.CompilerParams(
            dimension_semantics=("parallel", "arbitrary"),
            vmem_limit_bytes=vmem_limit),
        cost_estimate=cost,
    )(div_p, seed_arr, inp_p, delta_p, *weights)

    return out_p[:T, :B, :nout]


# ---------------------------------------------------------------------------
# Parameter construction (mirrors the module's __init__) and kernel packing.
# ---------------------------------------------------------------------------
def init_params(key, ninp, nhid, nout):
    std_cell = 1.0 / math.sqrt(nhid)              # LEMCellODE2.reset_parameters
    std_st = 1.0 / math.sqrt(2 * nhid)            # nn.Linear default bound
    std_cls_b = 1.0 / math.sqrt(nhid)
    kaiming_std = math.sqrt(2.0 / nhid)           # kaiming_normal_ on classifier
    ks = jax.random.split(key, 12)
    u = lambda k, shape, s: jax.random.uniform(k, shape, jnp.float32, -s, s)
    return {
        "w_inp": u(ks[0], (ninp, 4 * nhid), std_cell),
        "b_inp": u(ks[1], (1, 4 * nhid), std_cell),
        "w_hid": u(ks[2], (nhid, 3 * nhid), std_cell),
        "b_hid": u(ks[3], (1, 3 * nhid), std_cell),
        "w_dt":  u(ks[4], (1, 2), std_cell),
        "b_dt":  u(ks[5], (1, 2), std_cell),
        "w_z":   u(ks[6], (nhid, nhid), std_cell),
        "b_z":   u(ks[7], (1, nhid), std_cell),
        "w_cls": kaiming_std * jax.random.normal(ks[8], (nhid, nout), jnp.float32),
        "b_cls": u(ks[9], (1, nout), std_cls_b),
        "w_st":  u(ks[10], (2 * nhid, 2 * nhid), std_st),
        "b_st":  u(ks[11], (1, 2 * nhid), std_st),
    }


def prepare_params(raw, *, ninp, nhid, nout):
    """Pad feature dims to 128 lanes, fuse inp2hid+hid2hid, cast weights bf16."""
    f32, bf16 = jnp.float32, jnp.bfloat16
    H = nhid
    Hp = _round_up(H, 128)
    P = _round_up(max(ninp, nout), 128)
    Kn = _round_up(2 * H, 128)        # noise lanes actually fed to stoch_linear

    w_inp, b_inp = raw["w_inp"], raw["b_inp"]
    w_hid, b_hid = raw["w_hid"], raw["b_hid"]

    # Fused gate weight: rows [0:P) <- x, rows [P:P+Hp) <- y.  Gate slots:
    # (dt1, dt2, z, y); hid2hid contributes to (dt1, dt2, -, y).  Padded
    # rows/cols stay zero so padded lanes provably stay zero.
    w_big = jnp.zeros((P + Hp, 4 * Hp), f32)
    for g in range(4):
        w_big = w_big.at[:ninp, g * Hp:g * Hp + H].set(w_inp[:, g * H:(g + 1) * H])
    for g_dst, g_src in ((0, 0), (1, 1), (3, 2)):
        w_big = w_big.at[P:P + H, g_dst * Hp:g_dst * Hp + H].set(
            w_hid[:, g_src * H:(g_src + 1) * H])

    b_big = jnp.zeros((1, 4 * Hp), f32)
    b_big = b_big.at[0, 0 * Hp:0 * Hp + H].set(b_inp[0, 0:H] + b_hid[0, 0:H])
    b_big = b_big.at[0, 1 * Hp:1 * Hp + H].set(b_inp[0, H:2 * H] + b_hid[0, H:2 * H])
    b_big = b_big.at[0, 2 * Hp:2 * Hp + H].set(b_inp[0, 2 * H:3 * H])
    b_big = b_big.at[0, 3 * Hp:3 * Hp + H].set(b_inp[0, 3 * H:4 * H] + b_hid[0, 2 * H:3 * H])

    w_z = jnp.zeros((Hp, Hp), f32).at[:H, :H].set(raw["w_z"])
    b_z = jnp.zeros((1, Hp), f32).at[0, :H].set(raw["b_z"][0])

    w_cls = jnp.zeros((Hp, P), f32).at[:H, :nout].set(raw["w_cls"])
    b_cls = jnp.zeros((1, P), f32).at[0, :nout].set(raw["b_cls"][0])

    # stoch_linear: only round_up(2H,128) noise lanes (rows [0:2H) real);
    # y-half outputs at cols [0:Hp), z-half at [Hp:2Hp).
    w_st = jnp.zeros((Kn, 2 * Hp), f32)
    w_st = w_st.at[:2 * H, 0:H].set(raw["w_st"][:, 0:H])
    w_st = w_st.at[:2 * H, Hp:Hp + H].set(raw["w_st"][:, H:2 * H])
    b_st = jnp.zeros((1, 2 * Hp), f32)
    b_st = b_st.at[0, 0:H].set(raw["b_st"][0, 0:H])
    b_st = b_st.at[0, Hp:Hp + H].set(raw["b_st"][0, H:2 * H])

    return {
        "w_big": w_big.astype(bf16), "b_big": b_big,
        "w_dt": raw["w_dt"].astype(f32), "b_dt": raw["b_dt"].astype(f32),
        "w_z": w_z.astype(bf16), "b_z": b_z,
        "w_cls": w_cls.astype(bf16), "b_cls": b_cls,
        "w_st": w_st.astype(bf16), "b_st": b_st,
    }


# ---------------------------------------------------------------------------
# Pure-JAX reference of the deterministic (ycoeff = zcoeff = 0) path, using the
# same bf16-matmul / f32-elementwise recipe as the kernel, for a self-check.
# ---------------------------------------------------------------------------
def _reference_forward_no_noise(inp, dt, raw, *, nhid, limit):
    f32 = jnp.float32
    bf = lambda a: a.astype(jnp.bfloat16)
    T, B, _ = inp.shape
    H = nhid
    dividers = jax.device_get(
        jnp.maximum(jnp.int32(1),
                    jnp.ceil(jnp.max(dt, axis=(1, 2)) / jnp.float32(limit)
                             ).astype(jnp.int32)))
    y = jnp.zeros((B, H), f32)
    z = jnp.zeros((B, H), f32)
    outs = []
    for t in range(T):
        x = inp[t]
        div = int(dividers[t])
        delta = dt[t] / div
        for _ in range(div):
            ti = jnp.dot(bf(x), bf(raw["w_inp"]), preferred_element_type=f32) + raw["b_inp"]
            th = jnp.dot(bf(y), bf(raw["w_hid"]), preferred_element_type=f32) + raw["b_hid"]
            i_dt1, i_dt2, i_z, i_y = (ti[:, k * H:(k + 1) * H] for k in range(4))
            h_dt1, h_dt2, h_y = (th[:, k * H:(k + 1) * H] for k in range(3))
            tdt = delta * raw["w_dt"] + raw["b_dt"]
            ms_bar = jax.nn.sigmoid(tdt[:, 0:1]) * jax.nn.sigmoid(i_dt1 + h_dt1)
            ms = jax.nn.sigmoid(tdt[:, 1:2]) * jax.nn.sigmoid(i_dt2 + h_dt2)
            z = (1.0 - ms) * z + ms * jnp.tanh(i_y + h_y)
            tz = jnp.dot(bf(z), bf(raw["w_z"]), preferred_element_type=f32) + raw["b_z"]
            y = (1.0 - ms_bar) * y + ms_bar * jnp.tanh(tz + i_z)
            x = jnp.dot(bf(y), bf(raw["w_cls"]), preferred_element_type=f32) + raw["b_cls"]
        outs.append(jnp.dot(bf(y), bf(raw["w_cls"]),
                            preferred_element_type=f32) + raw["b_cls"])
    return jnp.stack(outs, axis=0)


if __name__ == "__main__":
    # Small shapes: seq T=4, batch B=8, ninp=nout=8 (classifier output feeds
    # back into the cell when divider > 1), nhid=32.
    T, B, NINP, NHID, NOUT = 4, 8, 8, 32, 8

    root = jax.random.PRNGKey(0)
    k_params, k_inp, k_dt = jax.random.split(root, 3)

    raw = init_params(k_params, NINP, NHID, NOUT)
    pp = prepare_params(raw, ninp=NINP, nhid=NHID, nout=NOUT)
    inp = jax.random.normal(k_inp, (T, B, NINP), jnp.float32)
    dt = jax.random.uniform(k_dt, (T, B, 1), jnp.float32, 0.05, 0.3)
    seed = jnp.array([1234], jnp.int32)

    # 1) Deterministic path (noise coefficients 0): must match the JAX reference.
    out_det = jax.block_until_ready(
        lemode2_forward(inp, dt, seed, pp, nout=NOUT,
                        ycoeff=0.0, zcoeff=0.0, limit=0.1))
    ref_det = _reference_forward_no_noise(inp, dt, raw, nhid=NHID, limit=0.1)
    err = float(jnp.max(jnp.abs(out_det - ref_det)))
    assert err < 2e-2, f"deterministic path mismatch: max abs err {err}"

    # 2) Full stochastic forward.
    out = jax.block_until_ready(
        lemode2_forward(inp, dt, seed, pp, nout=NOUT,
                        ycoeff=1.0, zcoeff=1.0, limit=0.1))
    assert out.shape == (T, B, NOUT), out.shape
    assert bool(jnp.all(jnp.isfinite(out)))
    print("KERNEL_OK")
</pallas_src>

<mosaic_0001>
module attributes {stable_mosaic.version = 11 : i64} {
  func.func @_lemode2_kernel(%arg0: i32, %arg1: i32, %arg2: memref<4xi32, #tpu.memory_space<smem>>, %arg3: memref<1xi32, #tpu.memory_space<smem>>, %arg4: memref<4x8x128xf32, #tpu.memory_space<vmem>>, %arg5: memref<4x8x1xf32, #tpu.memory_space<vmem>>, %arg6: memref<256x512xbf16, #tpu.memory_space<vmem>>, %arg7: memref<1x512xf32, #tpu.memory_space<vmem>>, %arg8: memref<1x2xf32, #tpu.memory_space<vmem>>, %arg9: memref<1x2xf32, #tpu.memory_space<vmem>>, %arg10: memref<128x128xbf16, #tpu.memory_space<vmem>>, %arg11: memref<1x128xf32, #tpu.memory_space<vmem>>, %arg12: memref<128x128xbf16, #tpu.memory_space<vmem>>, %arg13: memref<1x128xf32, #tpu.memory_space<vmem>>, %arg14: memref<128x256xbf16, #tpu.memory_space<vmem>>, %arg15: memref<1x256xf32, #tpu.memory_space<vmem>>, %arg16: memref<4x8x128xf32, #tpu.memory_space<vmem>>, %arg17: memref<8x128xf32, #tpu.memory_space<vmem>>, %arg18: memref<8x128xf32, #tpu.memory_space<vmem>>, %arg19: memref<8x256xbf16, #tpu.memory_space<vmem>>) attributes {dimension_semantics = [#tpu.dimension_semantics<parallel>, #tpu.dimension_semantics<arbitrary>], iteration_bounds = array<i64: 1, 1>, scalar_prefetch = 2 : i64, scratch_operands = 3 : i64, tpu.core_type = #tpu.core_type<tc>, window_params = [{transform_indices = @transform_0, window_bounds = array<i64: 4, 8, 128>}, {transform_indices = @transform_1, window_bounds = array<i64: 4, 8, 1>}, {pipeline_mode = #tpu.pipeline_mode<synchronous>, transform_indices = @transform_2, window_bounds = array<i64: 256, 512>}, {pipeline_mode = #tpu.pipeline_mode<synchronous>, transform_indices = @transform_3, window_bounds = array<i64: 1, 512>}, {pipeline_mode = #tpu.pipeline_mode<synchronous>, transform_indices = @transform_4, window_bounds = array<i64: 1, 2>}, {pipeline_mode = #tpu.pipeline_mode<synchronous>, transform_indices = @transform_5, window_bounds = array<i64: 1, 2>}, {pipeline_mode = #tpu.pipeline_mode<synchronous>, transform_indices = @transform_6, window_bounds = array<i64: 128, 128>}, {pipeline_mode = #tpu.pipeline_mode<synchronous>, transform_indices = @transform_7, window_bounds = array<i64: 1, 128>}, {pipeline_mode = #tpu.pipeline_mode<synchronous>, transform_indices = @transform_8, window_bounds = array<i64: 128, 128>}, {pipeline_mode = #tpu.pipeline_mode<synchronous>, transform_indices = @transform_9, window_bounds = array<i64: 1, 128>}, {pipeline_mode = #tpu.pipeline_mode<synchronous>, transform_indices = @transform_10, window_bounds = array<i64: 128, 256>}, {pipeline_mode = #tpu.pipeline_mode<synchronous>, transform_indices = @transform_11, window_bounds = array<i64: 1, 256>}, {transform_indices = @transform_12, window_bounds = array<i64: 4, 8, 128>}]} {
    %c0_i32 = arith.constant 0 : i32
    %0 = arith.cmpi eq, %arg1, %c0_i32 : i32
    %1 = arith.extui %0 : i1 to i32
    %c0_i32_0 = arith.constant 0 : i32
    %2 = arith.cmpi ne, %1, %c0_i32_0 : i32
    scf.if %2 {
      %cst = arith.constant 0.000000e+00 : f32
      %15 = vector.broadcast %cst : f32 to vector<8x128xf32>
      %c0_3 = arith.constant 0 : index
      %c0_4 = arith.constant 0 : index
      %16 = vector.load %arg17[%c0_3, %c0_4] : memref<8x128xf32, #tpu.memory_space<vmem>>, vector<8x128xf32>
      tpu.vector_store %arg17[%c0_3, %c0_4], %15 {strides = array<i32>} : memref<8x128xf32, #tpu.memory_space<vmem>>, vector<8x128xf32>,
      %cst_5 = arith.constant 0.000000e+00 : f32
      %17 = vector.broadcast %cst_5 : f32 to vector<8x128xf32>
      %c0_6 = arith.constant 0 : index
      %c0_7 = arith.constant 0 : index
      %18 = vector.load %arg18[%c0_6, %c0_7] : memref<8x128xf32, #tpu.memory_space<vmem>>, vector<8x128xf32>
      tpu.vector_store %arg18[%c0_6, %c0_7], %17 {strides = array<i32>} : memref<8x128xf32, #tpu.memory_space<vmem>>, vector<8x128xf32>,
    } else {
    }
    %c0 = arith.constant 0 : index
    %3 = memref.load %arg3[%c0] : memref<1xi32, #tpu.memory_space<smem>>
    %4 = tpu.iota {dimensions = array<i32: 0>} : vector<8x64xi32>
    %c8_i32 = arith.constant 8 : i32
    %5 = arith.muli %arg0, %c8_i32 : i32
    %6 = vector.broadcast %5 : i32 to vector<8x64xi32>
    %7 = arith.addi %4, %6 : vector<8x64xi32>
    %8 = tpu.iota {dimensions = array<i32: 1>} : vector<8x64xi32>
    %c64_i32 = arith.constant 64 : i32
    %9 = vector.broadcast %c64_i32 : i32 to vector<8x64xi32>
    %10 = arith.muli %7, %9 : vector<8x64xi32>
    %11 = arith.addi %10, %8 : vector<8x64xi32>
    %c-1640531527_i32 = arith.constant -1640531527 : i32
    %12 = vector.broadcast %c-1640531527_i32 : i32 to vector<8x64xi32>
    %13 = arith.muli %11, %12 : vector<8x64xi32>
    %c0_i32_1 = arith.constant 0 : i32
    %c4_i32 = arith.constant 4 : i32
    %14 = arith.addi %c0_i32_1, %c4_i32 : i32
    %c1_i32 = arith.constant 1 : i32
    scf.for %arg20 = %c0_i32_1 to %14 step %c1_i32  : i32 {
      %c4_i32_3 = arith.constant 4 : i32
      %15 = arith.muli %arg1, %c4_i32_3 : i32
      %16 = arith.addi %15, %arg20 : i32
      %17 = arith.index_cast %arg20 : i32 to index
      %c0_4 = arith.constant 0 : index
      %c0_5 = arith.constant 0 : index
      %18 = vector.load %arg4[%17, %c0_4, %c0_5] : memref<4x8x128xf32, #tpu.memory_space<vmem>>, vector<1x8x128xf32>
      %19 = vector.shape_cast %18 : vector<1x8x128xf32> to vector<8x128xf32>
      %20 = arith.index_cast %arg20 : i32 to index
      %c0_6 = arith.constant 0 : index
      %c0_7 = arith.constant 0 : index
      %21 = vector.load %arg5[%20, %c0_6, %c0_7] : memref<4x8x1xf32, #tpu.memory_space<vmem>>, vector<1x8x1xf32>
      %22 = vector.shape_cast %21 : vector<1x8x1xf32> to vector<8x1xf32>
      %c0_8 = arith.constant 0 : index
      %c0_9 = arith.constant 0 : index
      %23 = vector.load %arg8[%c0_8, %c0_9] : memref<1x2xf32, #tpu.memory_space<vmem>>, vector<1x2xf32>
      %24 = vector.broadcast %22 : vector<8x1xf32> to vector<8x2xf32>
      %25 = vector.broadcast %23 : vector<1x2xf32> to vector<8x2xf32>
      %26 = arith.mulf %24, %25 : vector<8x2xf32>
      %c0_10 = arith.constant 0 : index
      %c0_11 = arith.constant 0 : index
      %27 = vector.load %arg9[%c0_10, %c0_11] : memref<1x2xf32, #tpu.memory_space<vmem>>, vector<1x2xf32>
      %28 = vector.broadcast %27 : vector<1x2xf32> to vector<8x2xf32>
      %29 = arith.addf %26, %28 : vector<8x2xf32>
      %30 = vector.extract_strided_slice %29 {offsets = [0, 0], sizes = [8, 1], strides = [1, 1]} : vector<8x2xf32> to vector<8x1xf32>
      %31 = arith.negf %30 : vector<8x1xf32>
      %32 = math.exp %31 : vector<8x1xf32>
      %cst = arith.constant 1.000000e+00 : f32
      %33 = vector.broadcast %cst : f32 to vector<8x1xf32>
      %34 = arith.addf %33, %32 : vector<8x1xf32>
      %35 = arith.divf %33, %34 : vector<8x1xf32>
      %36 = vector.shape_cast %35 : vector<8x1xf32> to vector<8x1xf32>
      %37 = vector.broadcast %36 : vector<8x1xf32> to vector<8x128xf32>
      %38 = vector.extract_strided_slice %29 {offsets = [0, 1], sizes = [8, 1], strides = [1, 1]} : vector<8x2xf32> to vector<8x1xf32>
      %39 = arith.negf %38 : vector<8x1xf32>
      %40 = math.exp %39 : vector<8x1xf32>
      %cst_12 = arith.constant 1.000000e+00 : f32
      %41 = vector.broadcast %cst_12 : f32 to vector<8x1xf32>
      %42 = arith.addf %41, %40 : vector<8x1xf32>
      %43 = arith.divf %41, %42 : vector<8x1xf32>
      %44 = vector.shape_cast %43 : vector<8x1xf32> to vector<8x1xf32>
      %45 = vector.broadcast %44 : vector<8x1xf32> to vector<8x128xf32>
      %cst_13 = arith.constant 0.000000e+00 : f32
      %46 = vector.broadcast %cst_13 : f32 to vector<8x1xf32>
      %47 = arith.mulf %46, %22 : vector<8x1xf32>
      %48 = vector.shape_cast %47 : vector<8x1xf32> to vector<8x1xf32>
      %49 = vector.broadcast %48 : vector<8x1xf32> to vector<8x128xf32>
      %cst_14 = arith.constant 0.000000e+00 : f32
      %50 = vector.broadcast %cst_14 : f32 to vector<8x1xf32>
      %51 = arith.mulf %50, %22 : vector<8x1xf32>
      %52 = vector.shape_cast %51 : vector<8x1xf32> to vector<8x1xf32>
      %53 = vector.broadcast %52 : vector<8x1xf32> to vector<8x128xf32>
      %c-1640531527_i32_15 = arith.constant -1640531527 : i32
      %54 = arith.muli %16, %c-1640531527_i32_15 : i32
      %55 = arith.xori %3, %54 : i32
      %c16_i32 = arith.constant 16 : i32
      %56 = arith.shrui %55, %c16_i32 : i32
      %57 = arith.xori %55, %56 : i32
      %c2146121005_i32 = arith.constant 2146121005 : i32
      %58 = arith.muli %57, %c2146121005_i32 : i32
      %c15_i32 = arith.constant 15 : i32
      %59 = arith.shrui %58, %c15_i32 : i32
      %60 = arith.xori %58, %59 : i32
      %c-2073254261_i32 = arith.constant -2073254261 : i32
      %61 = arith.muli %60, %c-2073254261_i32 : i32
      %c16_i32_16 = arith.constant 16 : i32
      %62 = arith.shrui %61, %c16_i32_16 : i32
      %63 = arith.xori %61, %62 : i32
      %64 = arith.truncf %19 : vector<8x128xf32> to vector<8x128xbf16>
      %c0_17 = arith.constant 0 : index
      %c0_18 = arith.constant 0 : index
      %65 = vector.load %arg19[%c0_17, %c0_18] : memref<8x256xbf16, #tpu.memory_space<vmem>>, vector<8x128xbf16>
      tpu.vector_store %arg19[%c0_17, %c0_18], %64 {strides = array<i32>} : memref<8x256xbf16, #tpu.memory_space<vmem>>, vector<8x128xbf16>,
      %c0_19 = arith.constant 0 : index
      %c0_20 = arith.constant 0 : index
      %66 = vector.load %arg17[%c0_19, %c0_20] : memref<8x128xf32, #tpu.memory_space<vmem>>, vector<8x128xf32>
      %67 = arith.truncf %66 : vector<8x128xf32> to vector<8x128xbf16>
      %c0_21 = arith.constant 0 : index
      %c128 = arith.constant 128 : index
      %68 = vector.load %arg19[%c0_21, %c128] : memref<8x256xbf16, #tpu.memory_space<vmem>>, vector<8x128xbf16>
      tpu.vector_store %arg19[%c0_21, %c128], %67 {strides = array<i32>} : memref<8x256xbf16, #tpu.memory_space<vmem>>, vector<8x128xbf16>,
      %69 = arith.index_cast %16 : i32 to index
      %70 = memref.load %arg2[%69] : memref<4xi32, #tpu.memory_space<smem>>
      %c0_22 = arith.constant 0 : index
      %c0_23 = arith.constant 0 : index
      %71 = vector.load %arg17[%c0_22, %c0_23] : memref<8x128xf32, #tpu.memory_space<vmem>>, vector<8x128xf32>
      %c0_24 = arith.constant 0 : index
      %c0_25 = arith.constant 0 : index
      %72 = vector.load %arg18[%c0_24, %c0_25] : memref<8x128xf32, #tpu.memory_space<vmem>>, vector<8x128xf32>
      %c0_i32_26 = arith.constant 0 : i32
      %73 = arith.subi %70, %c0_i32_26 : i32
      %74 = arith.addi %c0_i32_26, %73 : i32
      %c1_i32_27 = arith.constant 1 : i32
      %75:2 = scf.for %arg21 = %c0_i32_26 to %74 step %c1_i32_27 iter_args(%arg22 = %71, %arg23 = %72) -> (vector<8x128xf32>, vector<8x128xf32>)  : i32 {
        %c1_i32_39 = arith.constant 1 : i32
        %88 = arith.addi %arg21, %c1_i32_39 : i32
        %c-2048144789_i32 = arith.constant -2048144789 : i32
        %89 = arith.muli %88, %c-2048144789_i32 : i32
        %90 = arith.xori %63, %89 : i32
        %c16_i32_40 = arith.constant 16 : i32
        %91 = arith.shrui %90, %c16_i32_40 : i32
        %92 = arith.xori %90, %91 : i32
        %c2146121005_i32_41 = arith.constant 2146121005 : i32
        %93 = arith.muli %92, %c2146121005_i32_41 : i32
        %c15_i32_42 = arith.constant 15 : i32
        %94 = arith.shrui %93, %c15_i32_42 : i32
        %95 = arith.xori %93, %94 : i32
        %c-2073254261_i32_43 = arith.constant -2073254261 : i32
        %96 = arith.muli %95, %c-2073254261_i32_43 : i32
        %c16_i32_44 = arith.constant 16 : i32
        %97 = arith.shrui %96, %c16_i32_44 : i32
        %98 = arith.xori %96, %97 : i32
        %99 = vector.broadcast %98 : i32 to vector<8x64xi32>
        %100 = arith.addi %13, %99 : vector<8x64xi32>
        %c16_i32_45 = arith.constant 16 : i32
        %101 = vector.broadcast %c16_i32_45 : i32 to vector<8x64xi32>
        %102 = arith.shrui %100, %101 : vector<8x64xi32>
        %103 = arith.xori %100, %102 : vector<8x64xi32>
        %c2146121005_i32_46 = arith.constant 2146121005 : i32
        %104 = vector.broadcast %c2146121005_i32_46 : i32 to vector<8x64xi32>
        %105 = arith.muli %103, %104 : vector<8x64xi32>
        %c15_i32_47 = arith.constant 15 : i32
        %106 = vector.broadcast %c15_i32_47 : i32 to vector<8x64xi32>
        %107 = arith.shrui %105, %106 : vector<8x64xi32>
        %108 = arith.xori %105, %107 : vector<8x64xi32>
        %c-2073254261_i32_48 = arith.constant -2073254261 : i32
        %109 = vector.broadcast %c-2073254261_i32_48 : i32 to vector<8x64xi32>
        %110 = arith.muli %108, %109 : vector<8x64xi32>
        %c16_i32_49 = arith.constant 16 : i32
        %111 = vector.broadcast %c16_i32_49 : i32 to vector<8x64xi32>
        %112 = arith.shrui %110, %111 : vector<8x64xi32>
        %113 = arith.xori %110, %112 : vector<8x64xi32>
        %c1757159915_i32 = arith.constant 1757159915 : i32
        %114 = vector.broadcast %c1757159915_i32 : i32 to vector<8x64xi32>
        %115 = arith.xori %113, %114 : vector<8x64xi32>
        %c16_i32_50 = arith.constant 16 : i32
        %116 = vector.broadcast %c16_i32_50 : i32 to vector<8x64xi32>
        %117 = arith.shrui %115, %116 : vector<8x64xi32>
        %118 = arith.xori %115, %117 : vector<8x64xi32>
        %c2146121005_i32_51 = arith.constant 2146121005 : i32
        %119 = vector.broadcast %c2146121005_i32_51 : i32 to vector<8x64xi32>
        %120 = arith.muli %118, %119 : vector<8x64xi32>
        %c15_i32_52 = arith.constant 15 : i32
        %121 = vector.broadcast %c15_i32_52 : i32 to vector<8x64xi32>
        %122 = arith.shrui %120, %121 : vector<8x64xi32>
        %123 = arith.xori %120, %122 : vector<8x64xi32>
        %c-2073254261_i32_53 = arith.constant -2073254261 : i32
        %124 = vector.broadcast %c-2073254261_i32_53 : i32 to vector<8x64xi32>
        %125 = arith.muli %123, %124 : vector<8x64xi32>
        %c16_i32_54 = arith.constant 16 : i32
        %126 = vector.broadcast %c16_i32_54 : i32 to vector<8x64xi32>
        %127 = arith.shrui %125, %126 : vector<8x64xi32>
        %128 = arith.xori %125, %127 : vector<8x64xi32>
        %c9_i32 = arith.constant 9 : i32
        %129 = vector.broadcast %c9_i32 : i32 to vector<8x64xi32>
        %130 = arith.shrui %113, %129 : vector<8x64xi32>
        %c1065353216_i32 = arith.constant 1065353216 : i32
        %131 = vector.broadcast %c1065353216_i32 : i32 to vector<8x64xi32>
        %132 = arith.ori %130, %131 : vector<8x64xi32>
        %133 = tpu.bitcast %132 : vector<8x64xi32> -> vector<8x64xf32>
        %cst_55 = arith.constant 1.000000e+00 : f32
        %134 = vector.broadcast %cst_55 : f32 to vector<8x64xf32>
        %135 = arith.subf %133, %134 : vector<8x64xf32>
        %cst_56 = arith.constant 1.000000e+00 : f32
        %136 = vector.broadcast %cst_56 : f32 to vector<8x64xf32>
        %137 = arith.subf %136, %135 : vector<8x64xf32>
        %c9_i32_57 = arith.constant 9 : i32
        %138 = vector.broadcast %c9_i32_57 : i32 to vector<8x64xi32>
        %139 = arith.shrui %128, %138 : vector<8x64xi32>
        %c1065353216_i32_58 = arith.constant 1065353216 : i32
        %140 = vector.broadcast %c1065353216_i32_58 : i32 to vector<8x64xi32>
        %141 = arith.ori %139, %140 : vector<8x64xi32>
        %142 = tpu.bitcast %141 : vector<8x64xi32> -> vector<8x64xf32>
        %cst_59 = arith.constant 1.000000e+00 : f32
        %143 = vector.broadcast %cst_59 : f32 to vector<8x64xf32>
        %144 = arith.subf %142, %143 : vector<8x64xf32>
        %145 = math.log %137 : vector<8x64xf32>
        %cst_60 = arith.constant -2.000000e+00 : f32
        %146 = vector.broadcast %cst_60 : f32 to vector<8x64xf32>
        %147 = arith.mulf %146, %145 : vector<8x64xf32>
        %148 = math.sqrt %147 : vector<8x64xf32>
        %cst_61 = arith.constant 6.28318548 : f32
        %149 = vector.broadcast %cst_61 : f32 to vector<8x64xf32>
        %150 = arith.mulf %149, %144 : vector<8x64xf32>
        %151 = math.cos %150 : vector<8x64xf32>
        %152 = arith.mulf %148, %151 : vector<8x64xf32>
        %153 = math.sin %150 : vector<8x64xf32>
        %154 = arith.mulf %148, %153 : vector<8x64xf32>
        %155 = tpu.concatenate %152, %154 in 1 : vector<8x64xf32>, vector<8x64xf32> -> vector<8x128xf32>
        %156 = arith.truncf %155 : vector<8x128xf32> to vector<8x128xbf16>
        %c0_62 = arith.constant 0 : index
        %c0_63 = arith.constant 0 : index
        %157 = vector.load %arg14[%c0_62, %c0_63] : memref<128x256xbf16, #tpu.memory_space<vmem>>, vector<128x256xbf16>
        %cst_64 = arith.constant dense<0.000000e+00> : vector<8x256xf32>
        %158 = tpu.matmul %156, %157, %cst_64 {dimension_numbers = #tpu.dot_dimension_numbers<[1], [0], [0], [1], [0, 0, 1, 1], [], []>} : vector<8x128xbf16>, vector<128x256xbf16>, vector<8x256xf32> -> vector<8x256xf32>
        %c0_65 = arith.constant 0 : index
        %c0_66 = arith.constant 0 : index
        %159 = vector.load %arg15[%c0_65, %c0_66] : memref<1x256xf32, #tpu.memory_space<vmem>>, vector<1x256xf32>
        %160 = vector.broadcast %159 : vector<1x256xf32> to vector<8x256xf32>
        %161 = arith.addf %158, %160 : vector<8x256xf32>
        %162 = math.tanh %161 : vector<8x256xf32>
        %c0_67 = arith.constant 0 : index
        %c0_68 = arith.constant 0 : index
        %163 = vector.load %arg19[%c0_67, %c0_68] : memref<8x256xbf16, #tpu.memory_space<vmem>>, vector<8x256xbf16>
        %c0_69 = arith.constant 0 : index
        %c0_70 = arith.constant 0 : index
        %164 = vector.load %arg6[%c0_69, %c0_70] : memref<256x512xbf16, #tpu.memory_space<vmem>>, vector<256x512xbf16>
        %cst_71 = arith.constant dense<0.000000e+00> : vector<8x512xf32>
        %165 = tpu.matmul %163, %164, %cst_71 {dimension_numbers = #tpu.dot_dimension_numbers<[1], [0], [0], [1], [0, 0, 1, 1], [], []>} : vector<8x256xbf16>, vector<256x512xbf16>, vector<8x512xf32> -> vector<8x512xf32>
        %c0_72 = arith.constant 0 : index
        %c0_73 = arith.constant 0 : index
        %166 = vector.load %arg7[%c0_72, %c0_73] : memref<1x512xf32, #tpu.memory_space<vmem>>, vector<1x512xf32>
        %167 = vector.broadcast %166 : vector<1x512xf32> to vector<8x512xf32>
        %168 = arith.addf %165, %167 : vector<8x512xf32>
        %169 = vector.extract_strided_slice %168 {offsets = [0, 0], sizes = [8, 128], strides = [1, 1]} : vector<8x512xf32> to vector<8x128xf32>
        %170 = arith.negf %169 : vector<8x128xf32>
        %171 = math.exp %170 : vector<8x128xf32>
        %cst_74 = arith.constant 1.000000e+00 : f32
        %172 = vector.broadcast %cst_74 : f32 to vector<8x128xf32>
        %173 = arith.addf %172, %171 : vector<8x128xf32>
        %174 = arith.divf %172, %173 : vector<8x128xf32>
        %175 = arith.mulf %37, %174 : vector<8x128xf32>
        %176 = vector.extract_strided_slice %168 {offsets = [0, 128], sizes = [8, 128], strides = [1, 1]} : vector<8x512xf32> to vector<8x128xf32>
        %177 = arith.negf %176 : vector<8x128xf32>
        %178 = math.exp %177 : vector<8x128xf32>
        %cst_75 = arith.constant 1.000000e+00 : f32
        %179 = vector.broadcast %cst_75 : f32 to vector<8x128xf32>
        %180 = arith.addf %179, %178 : vector<8x128xf32>
        %181 = arith.divf %179, %180 : vector<8x128xf32>
        %182 = arith.mulf %45, %181 : vector<8x128xf32>
        %cst_76 = arith.constant 1.000000e+00 : f32
        %183 = vector.broadcast %cst_76 : f32 to vector<8x128xf32>
        %184 = arith.subf %183, %182 : vector<8x128xf32>
        %185 = arith.mulf %184, %arg23 : vector<8x128xf32>
        %186 = vector.extract_strided_slice %168 {offsets = [0, 384], sizes = [8, 128], strides = [1, 1]} : vector<8x512xf32> to vector<8x128xf32>
        %187 = math.tanh %186 : vector<8x128xf32>
        %188 = arith.mulf %182, %187 : vector<8x128xf32>
        %189 = arith.addf %185, %188 : vector<8x128xf32>
        %190 = arith.truncf %189 : vector<8x128xf32> to vector<8x128xbf16>
        %c0_77 = arith.constant 0 : index
        %c0_78 = arith.constant 0 : index
        %191 = vector.load %arg10[%c0_77, %c0_78] : memref<128x128xbf16, #tpu.memory_space<vmem>>, vector<128x128xbf16>
        %cst_79 = arith.constant dense<0.000000e+00> : vector<8x128xf32>
        %192 = tpu.matmul %190, %191, %cst_79 {dimension_numbers = #tpu.dot_dimension_numbers<[1], [0], [0], [1], [0, 0, 1, 1], [], []>} : vector<8x128xbf16>, vector<128x128xbf16>, vector<8x128xf32> -> vector<8x128xf32>
        %c0_80 = arith.constant 0 : index
        %c0_81 = arith.constant 0 : index
        %193 = vector.load %arg11[%c0_80, %c0_81] : memref<1x128xf32, #tpu.memory_space<vmem>>, vector<1x128xf32>
        %194 = vector.broadcast %193 : vector<1x128xf32> to vector<8x128xf32>
        %195 = arith.addf %192, %194 : vector<8x128xf32>
        %cst_82 = arith.constant 1.000000e+00 : f32
        %196 = vector.broadcast %cst_82 : f32 to vector<8x128xf32>
        %197 = arith.subf %196, %175 : vector<8x128xf32>
        %198 = arith.mulf %197, %arg22 : vector<8x128xf32>
        %199 = vector.extract_strided_slice %168 {offsets = [0, 256], sizes = [8, 128], strides = [1, 1]} : vector<8x512xf32> to vector<8x128xf32>
        %200 = arith.addf %195, %199 : vector<8x128xf32>
        %201 = math.tanh %200 : vector<8x128xf32>
        %202 = arith.mulf %175, %201 : vector<8x128xf32>
        %203 = arith.addf %198, %202 : vector<8x128xf32>
        %204 = arith.truncf %203 : vector<8x128xf32> to vector<8x128xbf16>
        %c0_83 = arith.constant 0 : index
        %c0_84 = arith.constant 0 : index
        %205 = vector.load %arg12[%c0_83, %c0_84] : memref<128x128xbf16, #tpu.memory_space<vmem>>, vector<128x128xbf16>
        %cst_85 = arith.constant dense<0.000000e+00> : vector<8x128xf32>
        %206 = tpu.matmul %204, %205, %cst_85 {dimension_numbers = #tpu.dot_dimension_numbers<[1], [0], [0], [1], [0, 0, 1, 1], [], []>} : vector<8x128xbf16>, vector<128x128xbf16>, vector<8x128xf32> -> vector<8x128xf32>
        %c0_86 = arith.constant 0 : index
        %c0_87 = arith.constant 0 : index
        %207 = vector.load %arg13[%c0_86, %c0_87] : memref<1x128xf32, #tpu.memory_space<vmem>>, vector<1x128xf32>
        %208 = vector.broadcast %207 : vector<1x128xf32> to vector<8x128xf32>
        %209 = arith.addf %206, %208 : vector<8x128xf32>
        %210 = vector.extract_strided_slice %162 {offsets = [0, 0], sizes = [8, 128], strides = [1, 1]} : vector<8x256xf32> to vector<8x128xf32>
        %211 = arith.mulf %49, %210 : vector<8x128xf32>
        %212 = arith.addf %203, %211 : vector<8x128xf32>
        %213 = vector.extract_strided_slice %162 {offsets = [0, 128], sizes = [8, 128], strides = [1, 1]} : vector<8x256xf32> to vector<8x128xf32>
        %214 = arith.mulf %53, %213 : vector<8x128xf32>
        %215 = arith.addf %189, %214 : vector<8x128xf32>
        %216 = arith.truncf %209 : vector<8x128xf32> to vector<8x128xbf16>
        %c0_88 = arith.constant 0 : index
        %c0_89 = arith.constant 0 : index
        %217 = vector.load %arg19[%c0_88, %c0_89] : memref<8x256xbf16, #tpu.memory_space<vmem>>, vector<8x128xbf16>
        tpu.vector_store %arg19[%c0_88, %c0_89], %216 {strides = array<i32>} : memref<8x256xbf16, #tpu.memory_space<vmem>>, vector<8x128xbf16>,
        %218 = arith.truncf %212 : vector<8x128xf32> to vector<8x128xbf16>
        %c0_90 = arith.constant 0 : index
        %c128_91 = arith.constant 128 : index
        %219 = vector.load %arg19[%c0_90, %c128_91] : memref<8x256xbf16, #tpu.memory_space<vmem>>, vector<8x128xbf16>
        tpu.vector_store %arg19[%c0_90, %c128_91], %218 {strides = array<i32>} : memref<8x256xbf16, #tpu.memory_space<vmem>>, vector<8x128xbf16>,
        scf.yield %212, %215 : vector<8x128xf32>, vector<8x128xf32>
      }
      %c0_28 = arith.constant 0 : index
      %c0_29 = arith.constant 0 : index
      %76 = vector.load %arg17[%c0_28, %c0_29] : memref<8x128xf32, #tpu.memory_space<vmem>>, vector<8x128xf32>
      tpu.vector_store %arg17[%c0_28, %c0_29], %75#0 {strides = array<i32>} : memref<8x128xf32, #tpu.memory_space<vmem>>, vector<8x128xf32>,
      %c0_30 = arith.constant 0 : index
      %c0_31 = arith.constant 0 : index
      %77 = vector.load %arg18[%c0_30, %c0_31] : memref<8x128xf32, #tpu.memory_space<vmem>>, vector<8x128xf32>
      tpu.vector_store %arg18[%c0_30, %c0_31], %75#1 {strides = array<i32>} : memref<8x128xf32, #tpu.memory_space<vmem>>, vector<8x128xf32>,
      %78 = arith.truncf %75#0 : vector<8x128xf32> to vector<8x128xbf16>
      %c0_32 = arith.constant 0 : index
      %c0_33 = arith.constant 0 : index
      %79 = vector.load %arg12[%c0_32, %c0_33] : memref<128x128xbf16, #tpu.memory_space<vmem>>, vector<128x128xbf16>
      %cst_34 = arith.constant dense<0.000000e+00> : vector<8x128xf32>
      %80 = tpu.matmul %78, %79, %cst_34 {dimension_numbers = #tpu.dot_dimension_numbers<[1], [0], [0], [1], [0, 0, 1, 1], [], []>} : vector<8x128xbf16>, vector<128x128xbf16>, vector<8x128xf32> -> vector<8x128xf32>
      %c0_35 = arith.constant 0 : index
      %c0_36 = arith.constant 0 : index
      %81 = vector.load %arg13[%c0_35, %c0_36] : memref<1x128xf32, #tpu.memory_space<vmem>>, vector<1x128xf32>
      %82 = vector.broadcast %81 : vector<1x128xf32> to vector<8x128xf32>
      %83 = arith.addf %80, %82 : vector<8x128xf32>
      %84 = arith.index_cast %arg20 : i32 to index
      %c0_37 = arith.constant 0 : index
      %c0_38 = arith.constant 0 : index
      %85 = vector.load %arg16[%84, %c0_37, %c0_38] : memref<4x8x128xf32, #tpu.memory_space<vmem>>, vector<1x8x128xf32>
      %86 = vector.shape_cast %85 : vector<1x8x128xf32> to vector<8x128xf32>
      %87 = vector.shape_cast %83 : vector<8x128xf32> to vector<1x8x128xf32>
      tpu.vector_store %arg16[%84, %c0_37, %c0_38], %87 {strides = array<i32>} : memref<4x8x128xf32, #tpu.memory_space<vmem>>, vector<1x8x128xf32>,
    }
    %c4_i32_2 = arith.constant 4 : i32
    return
  }
  func.func @transform_0(%arg0: i32, %arg1: i32, %arg2: memref<4xi32, #tpu.memory_space<smem>>, %arg3: memref<1xi32, #tpu.memory_space<smem>>) -> (i32, i32, i32) {
    %c0_i32 = arith.constant 0 : i32
    %c0_i32_0 = arith.constant 0 : i32
    return %arg1, %arg0, %c0_i32 : i32, i32, i32
  }
  func.func @transform_1(%arg0: i32, %arg1: i32, %arg2: memref<4xi32, #tpu.memory_space<smem>>, %arg3: memref<1xi32, #tpu.memory_space<smem>>) -> (i32, i32, i32) {
    %c0_i32 = arith.constant 0 : i32
    %c0_i32_0 = arith.constant 0 : i32
    return %arg1, %arg0, %c0_i32 : i32, i32, i32
  }
  func.func @transform_2(%arg0: i32, %arg1: i32, %arg2: memref<4xi32, #tpu.memory_space<smem>>, %arg3: memref<1xi32, #tpu.memory_space<smem>>) -> (i32, i32) {
    %c0_i32 = arith.constant 0 : i32
    %c0_i32_0 = arith.constant 0 : i32
    %c0_i32_1 = arith.constant 0 : i32
    return %c0_i32, %c0_i32_0 : i32, i32
  }
  func.func @transform_3(%arg0: i32, %arg1: i32, %arg2: memref<4xi32, #tpu.memory_space<smem>>, %arg3: memref<1xi32, #tpu.memory_space<smem>>) -> (i32, i32) {
    %c0_i32 = arith.constant 0 : i32
    %c0_i32_0 = arith.constant 0 : i32
    %c0_i32_1 = arith.constant 0 : i32
    return %c0_i32, %c0_i32_0 : i32, i32
  }
  func.func @transform_4(%arg0: i32, %arg1: i32, %arg2: memref<4xi32, #tpu.memory_space<smem>>, %arg3: memref<1xi32, #tpu.memory_space<smem>>) -> (i32, i32) {
    %c0_i32 = arith.constant 0 : i32
    %c0_i32_0 = arith.constant 0 : i32
    %c0_i32_1 = arith.constant 0 : i32
    return %c0_i32, %c0_i32_0 : i32, i32
  }
  func.func @transform_5(%arg0: i32, %arg1: i32, %arg2: memref<4xi32, #tpu.memory_space<smem>>, %arg3: memref<1xi32, #tpu.memory_space<smem>>) -> (i32, i32) {
    %c0_i32 = arith.constant 0 : i32
    %c0_i32_0 = arith.constant 0 : i32
    %c0_i32_1 = arith.constant 0 : i32
    return %c0_i32, %c0_i32_0 : i32, i32
  }
  func.func @transform_6(%arg0: i32, %arg1: i32, %arg2: memref<4xi32, #tpu.memory_space<smem>>, %arg3: memref<1xi32, #tpu.memory_space<smem>>) -> (i32, i32) {
    %c0_i32 = arith.constant 0 : i32
    %c0_i32_0 = arith.constant 0 : i32
    %c0_i32_1 = arith.constant 0 : i32
    return %c0_i32, %c0_i32_0 : i32, i32
  }
  func.func @transform_7(%arg0: i32, %arg1: i32, %arg2: memref<4xi32, #tpu.memory_space<smem>>, %arg3: memref<1xi32, #tpu.memory_space<smem>>) -> (i32, i32) {
    %c0_i32 = arith.constant 0 : i32
    %c0_i32_0 = arith.constant 0 : i32
    %c0_i32_1 = arith.constant 0 : i32
    return %c0_i32, %c0_i32_0 : i32, i32
  }
  func.func @transform_8(%arg0: i32, %arg1: i32, %arg2: memref<4xi32, #tpu.memory_space<smem>>, %arg3: memref<1xi32, #tpu.memory_space<smem>>) -> (i32, i32) {
    %c0_i32 = arith.constant 0 : i32
    %c0_i32_0 = arith.constant 0 : i32
    %c0_i32_1 = arith.constant 0 : i32
    return %c0_i32, %c0_i32_0 : i32, i32
  }
  func.func @transform_9(%arg0: i32, %arg1: i32, %arg2: memref<4xi32, #tpu.memory_space<smem>>, %arg3: memref<1xi32, #tpu.memory_space<smem>>) -> (i32, i32) {
    %c0_i32 = arith.constant 0 : i32
    %c0_i32_0 = arith.constant 0 : i32
    %c0_i32_1 = arith.constant 0 : i32
    return %c0_i32, %c0_i32_0 : i32, i32
  }
  func.func @transform_10(%arg0: i32, %arg1: i32, %arg2: memref<4xi32, #tpu.memory_space<smem>>, %arg3: memref<1xi32, #tpu.memory_space<smem>>) -> (i32, i32) {
    %c0_i32 = arith.constant 0 : i32
    %c0_i32_0 = arith.constant 0 : i32
    %c0_i32_1 = arith.constant 0 : i32
    return %c0_i32, %c0_i32_0 : i32, i32
  }
  func.func @transform_11(%arg0: i32, %arg1: i32, %arg2: memref<4xi32, #tpu.memory_space<smem>>, %arg3: memref<1xi32, #tpu.memory_space<smem>>) -> (i32, i32) {
    %c0_i32 = arith.constant 0 : i32
    %c0_i32_0 = arith.constant 0 : i32
    %c0_i32_1 = arith.constant 0 : i32
    return %c0_i32, %c0_i32_0 : i32, i32
  }
  func.func @transform_12(%arg0: i32, %arg1: i32, %arg2: memref<4xi32, #tpu.memory_space<smem>>, %arg3: memref<1xi32, #tpu.memory_space<smem>>) -> (i32, i32, i32) {
    %c0_i32 = arith.constant 0 : i32
    %c0_i32_0 = arith.constant 0 : i32
    return %arg1, %arg0, %c0_i32 : i32, i32, i32
  }
}

</mosaic_0001>

<llo_original>
// kernel: lemode2_forward.1
$region0: #{lemode2_forward.1}
  #allocation0 [shape = 'u32[]', space=smem, size = 0x4, offset = 0x4, fixed_abs, tag = 'smem constant byte address 0x4 - core index']
  #allocation1 [shape = 'u32[72,128]{1,0:T(1,128)}', space=vmem, size = 0x9000, scoped, tag = 'internal scratch']
  #allocation2 [shape = 'f32[8,128]{1,0:T(8,128)}', space=vmem, size = 0x1000, scoped, tag = 'scratch operand']
  #allocation3 [shape = 'f32[8,128]{1,0:T(8,128)}', space=vmem, size = 0x1000, scoped, tag = 'scratch operand']
  #allocation4 [shape = 'bf16[8,256]{1,0:T(8,128)(2,1)}', space=vmem, size = 0x1000, scoped, tag = 'scratch operand']
  #allocation5 [shape = 's32[1]{0}', space=sflag, size = 0x4, scoped, tag = 'scoped memory for lemode2_forward.1']
  #allocation6 [shape = 'u8[512]{0}', space=smem, size = 0x200, scoped, tag = 'prefetched SMEM operand 0']
  #allocation7 [shape = 's32[1]{0:T(128)S(6)}', space=smem, size = 0x200, scoped, tag = 'prefetched SMEM operand 1']
  %s0 = inlined_call_operand.vmem [shape: s32[4], index: 0, kind: input, shape index: {}]
  %s1 = inlined_call_operand.<no memory space> [shape: s32[1], index: 1, kind: input, shape index: {}]
  %s2 = inlined_call_operand.vmem [shape: f32[4,8,128], index: 2, kind: input, shape index: {}]
  %s3 = inlined_call_operand.vmem [shape: f32[4,8,1], index: 3, kind: input, shape index: {}]
  %s4 = inlined_call_operand.hbm [shape: bf16[256,512], index: 4, kind: input, shape index: {}]
  %s5 = inlined_call_operand.vmem [shape: f32[1,512], index: 5, kind: input, shape index: {}]
  %s6 = inlined_call_operand.vmem [shape: f32[1,2], index: 6, kind: input, shape index: {}]
  %s7 = inlined_call_operand.vmem [shape: f32[1,2], index: 7, kind: input, shape index: {}]
  %s8 = inlined_call_operand.hbm [shape: bf16[128,128], index: 8, kind: input, shape index: {}]
  %s9 = inlined_call_operand.vmem [shape: f32[1,128], index: 9, kind: input, shape index: {}]
  %s10 = inlined_call_operand.hbm [shape: bf16[128,128], index: 10, kind: input, shape index: {}]
  %s11 = inlined_call_operand.vmem [shape: f32[1,128], index: 11, kind: input, shape index: {}]
  %s12 = inlined_call_operand.vmem [shape: bf16[128,256], index: 12, kind: input, shape index: {}]
  %s13 = inlined_call_operand.vmem [shape: f32[1,256], index: 13, kind: input, shape index: {}]
  %s14 = inlined_call_operand.hbm [shape: f32[4,8,128], index: 14, kind: output, shape index: {}]
  %s15 = sld [smem:[#allocation0]]
  $region88: #{lemode2_forward.1} parent=0
    _
  %s17 = ssub.s32 1, %s15
  %s18 = scalar_select 0, %s17, %s15
  %s20 = sshll.u32 %s0, 4
  %s21 = int_to_ptr.vmem [resolvable:$true] %s20
  %23 = dma.vmem_to_smem %s21, 16, [#allocation6], [#allocation5]
  %24 = sst [smem:[#allocation7]] %s1
  %26 = dma.done [#allocation5], 16
  %27 = sfence
  $region1: #{lemode2_forward.1} parent=0
    #allocation8 [shape = 'u8[262144]{0}', space=vmem, size = 0x40000, scoped, tag = 'input window, operand 4, single buffered']
    #allocation9 [shape = 's32[1]{0}', space=sflag, size = 0x4, scoped, tag = 'scoped memory for lemode2_forward.1']
    #allocation10 [shape = 's32[1]{0}', space=sflag, size = 0x4, scoped, tag = 'scoped memory for lemode2_forward.1']
    #allocation11 [shape = 'u8[32768]{0}', space=vmem, size = 0x8000, scoped, tag = 'input window, operand 8, single buffered']
    #allocation12 [shape = 's32[1]{0}', space=sflag, size = 0x4, scoped, tag = 'scoped memory for lemode2_forward.1']
    #allocation13 [shape = 'u8[32768]{0}', space=vmem, size = 0x8000, scoped, tag = 'input window, operand 10, single buffered']
    #allocation14 [shape = 'u8[16384]{0}', space=vmem, size = 0x4000, scoped, tag = 'output window, operand 0, single buffered']
    %28 = vsyncpa [#allocation9], 0
    %29 = vsyncpa [#allocation12], 0
    %30 = vsyncpa [#allocation10], 0
    // Predicated region
    $region2: #{lemode2_forward.1} parent=1 // pred_check
      _
    $region3: #{lemode2_forward.1} parent=1 // pred_check_branch
      %32 = sbr.rel (0) target = $region5
    $region4: #{lemode2_forward.1} parent=1 // pred_region
      _
    $region5: #{lemode2_forward.1} parent=1 // pred_fallthru
      _
    // Predicated region
    $region6: #{lemode2_forward.1} parent=1 // pred_check
      _
    $region7: #{lemode2_forward.1} parent=1 // pred_check_branch
      %34 = sbr.rel (0) target = $region9
    $region8: #{lemode2_forward.1} parent=1 // pred_region
      _
    $region9: #{lemode2_forward.1} parent=1 // pred_fallthru
      _
    // Predicated region
    $region10: #{lemode2_forward.1} parent=1 // pred_check
      _
    $region11: #{lemode2_forward.1} parent=1 // pred_check_branch
      %36 = sbr.rel (0) target = $region13
    $region12: #{lemode2_forward.1} parent=1 // pred_region
      %38 = vsyncadd [#allocation9], 0
      %s39 = sshll.u32 %s4, 4
      %s40 = int_to_ptr.hbm [resolvable:$true] %s39
      %s41 = sshll.u32 [#allocation8], 4
      %s42 = int_to_ptr.vmem [resolvable:$true] %s41
      %47 = dma.hbm_to_vmem [thread:$0]  %s40, 8192, %s42, [#allocation9], 256, 256, 16
    $region13: #{lemode2_forward.1} parent=1 // pred_fallthru
      _
    // Predicated region
    $region14: #{lemode2_forward.1} parent=1 // pred_check
      _
    $region15: #{lemode2_forward.1} parent=1 // pred_check_branch
      %49 = sbr.rel (0) target = $region17
    $region16: #{lemode2_forward.1} parent=1 // pred_region
      _
    $region17: #{lemode2_forward.1} parent=1 // pred_fallthru
      _
    // Predicated region
    $region18: #{lemode2_forward.1} parent=1 // pred_check
      _
    $region19: #{lemode2_forward.1} parent=1 // pred_check_branch
      %51 = sbr.rel (0) target = $region21
    $region20: #{lemode2_forward.1} parent=1 // pred_region
      _
    $region21: #{lemode2_forward.1} parent=1 // pred_fallthru
      _
    // Predicated region
    $region22: #{lemode2_forward.1} parent=1 // pred_check
      _
    $region23: #{lemode2_forward.1} parent=1 // pred_check_branch
      %53 = sbr.rel (0) target = $region25
    $region24: #{lemode2_forward.1} parent=1 // pred_region
      _
    $region25: #{lemode2_forward.1} parent=1 // pred_fallthru
      _
    // Predicated region
    $region26: #{lemode2_forward.1} parent=1 // pred_check
      _
    $region27: #{lemode2_forward.1} parent=1 // pred_check_branch
      %55 = sbr.rel (0) target = $region29
    $region28: #{lemode2_forward.1} parent=1 // pred_region
      %57 = vsyncadd [#allocation12], 0
      %s58 = sshll.u32 %s8, 4
      %s59 = int_to_ptr.hbm [resolvable:$true] %s58
      %s60 = sshll.u32 [#allocation11], 4
      %s61 = int_to_ptr.vmem [resolvable:$true] %s60
      %66 = dma.hbm_to_vmem [thread:$0]  %s59, 1024, %s61, [#allocation12], 64, 64, 4
    $region29: #{lemode2_forward.1} parent=1 // pred_fallthru
      _
    // Predicated region
    $region30: #{lemode2_forward.1} parent=1 // pred_check
      _
    $region31: #{lemode2_forward.1} parent=1 // pred_check_branch
      %68 = sbr.rel (0) target = $region33
    $region32: #{lemode2_forward.1} parent=1 // pred_region
      _
    $region33: #{lemode2_forward.1} parent=1 // pred_fallthru
      _
    // Predicated region
    $region34: #{lemode2_forward.1} parent=1 // pred_check
      _
    $region35: #{lemode2_forward.1} parent=1 // pred_check_branch
      %70 = sbr.rel (0) target = $region37
    $region36: #{lemode2_forward.1} parent=1 // pred_region
      %72 = vsyncadd [#allocation12], 0
      %s73 = sshll.u32 %s10, 4
      %s74 = int_to_ptr.hbm [resolvable:$true] %s73
      %s75 = sshll.u32 [#allocation13], 4
      %s76 = int_to_ptr.vmem [resolvable:$true] %s75
      %81 = dma.hbm_to_vmem [thread:$0]  %s74, 1024, %s76, [#allocation12], 64, 64, 4
    $region37: #{lemode2_forward.1} parent=1 // pred_fallthru
      _
    // Predicated region
    $region38: #{lemode2_forward.1} parent=1 // pred_check
      _
    $region39: #{lemode2_forward.1} parent=1 // pred_check_branch
      %83 = sbr.rel (0) target = $region41
    $region40: #{lemode2_forward.1} parent=1 // pred_region
      _
    $region41: #{lemode2_forward.1} parent=1 // pred_fallthru
      _
    // Predicated region
    $region42: #{lemode2_forward.1} parent=1 // pred_check
      _
    $region43: #{lemode2_forward.1} parent=1 // pred_check_branch
      %85 = sbr.rel (0) target = $region45
    $region44: #{lemode2_forward.1} parent=1 // pred_region
      _
    $region45: #{lemode2_forward.1} parent=1 // pred_fallthru
      _
    // Predicated region
    $region46: #{lemode2_forward.1} parent=1 // pred_check
      _
    $region47: #{lemode2_forward.1} parent=1 // pred_check_branch
      %87 = sbr.rel (0) target = $region49
    $region48: #{lemode2_forward.1} parent=1 // pred_region
      _
    $region49: #{lemode2_forward.1} parent=1 // pred_fallthru
      _
    // Predicated region
    $region50: #{lemode2_forward.1} parent=1 // pred_check
      _
    $region51: #{lemode2_forward.1} parent=1 // pred_check_branch
      %89 = sbr.rel (0) target = $region53
    $region52: #{lemode2_forward.1} parent=1 // pred_region
      %91 = dma.done [#allocation9], 8192
    $region53: #{lemode2_forward.1} parent=1 // pred_fallthru
      _
    // Predicated region
    $region54: #{lemode2_forward.1} parent=1 // pred_check
      _
    $region55: #{lemode2_forward.1} parent=1 // pred_check_branch
      %93 = sbr.rel (0) target = $region57
    $region56: #{lemode2_forward.1} parent=1 // pred_region
      %95 = dma.done [#allocation12], 1024
    $region57: #{lemode2_forward.1} parent=1 // pred_fallthru
      _
    // Predicated region
    $region58: #{lemode2_forward.1} parent=1 // pred_check
      _
    $region59: #{lemode2_forward.1} parent=1 // pred_check_branch
      %97 = sbr.rel (0) target = $region61
    $region60: #{lemode2_forward.1} parent=1 // pred_region
      %99 = dma.done [#allocation12], 1024
    $region61: #{lemode2_forward.1} parent=1 // pred_fallthru
      _
    %p100 = scmp.eq.s32.totalorder 0, 0
    // Predicated region
    $region62: #{lemode2_forward.1} parent=1 // pred_check
      %p101 = pneg %p100
    $region63: #{lemode2_forward.1} parent=1 // pred_check_branch
      %103 = sbr.rel (%p101) target = $region65
    $region64: #{lemode2_forward.1} parent=1 // pred_region
      %104 = vst [vmem:[#allocation2] sm:$0xff] 0.0
      %105 = vst [vmem:[#allocation3] sm:$0xff] 0.0
    $region65: #{lemode2_forward.1} parent=1 // pred_fallthru
      _
    %s106 = sld [smem:[#allocation7]]
    %v107 = vlaneseq
    %v108 = vshrl.u32 %v107, 7
    %s109 = smul.u32 0, 8
    %v110 = vstv %s109
    %v111 = vadd.s32 %v108, %v110
    %v112 = vlaneseq
    %v113 = vand.u32 %v112, 127
    %v114 = vmul.u32 %v111, 64
    %v115 = vadd.s32 %v114, %v113
    %v116 = vmul.u32 %v115, 2654435769
    loop: start=0, step=1, limit=4
    $region66: #{lemode2_forward.1} parent=1 // loop_pre_header
      _
    $region67: #{lemode2_forward.1} parent=1 // loop_header
      %s118 = sphi 0, %s122
      %p119 = scmp.ge.s32.totalorder %s118, 4
    $region68: #{lemode2_forward.1} parent=1 // loop_header_branch
      %121 = sbr.rel (%p119) target = $region72
    $region69: #{lemode2_forward.1} parent=1 // loop_body
      %s123 = smul.u32 0, 4
      %s124 = sadd.s32 %s123, %s118
      %s125 = smul.u32 %s118, 8
      %s126 = scalar_lea.vmem %s2, %s125
      %v127 = vld [vmem:[%s126] sm:$0xff]
      %s128 = scalar_lea.vmem %s3, %s125
      %v129 = vld [vmem:[%s128] sm:$0xff]
      %v130 = vld [vmem:[%s6] sm:$0x1]
      %132 = vset.pattern.permute.xlu0 0
      %133 = vperm.xlu0 %132, %v129
      %v134 = vpop.permute.xlu0 %133
      %v137 = vperm.slane %v130, 0
      %v139 = vmul.f32 %v134, %v137
      %v140 = vld [vmem:[%s7] sm:$0x1]
      %v142 = vperm.slane %v140, 0
      %v144 = vadd.f32 %v139, %v142
      %v145 = vxor.u32 %v144, 2147483648
      %v146 = vmul.f32 %v145, 1.442695
      %v147 = vpow.pop %v146
      %v148 = vadd.f32 %v147, 1.0
      %v149 = vrcp.pop %v148
      %v150 = vmul.f32 %v148, %v149
      %v151 = vsub.f32 1.0, %v150
      %v152 = vmul.f32 %v149, %v151
      %v153 = vadd.f32 %v149, %v152
      %vm154 = vweird.f32 %v148
      %vm155 = vweird.f32 %v149
      %vm156 = vmor %vm154, %vm155
      %v157 = vsel %vm156, %v149, %v153
      %v158 = vand.u32 2147483647, %v148
      %vm159 = vcmp.eq.f32.partialorder %v158, 8.507059e+37
      %v160 = vand.u32 %v148, 2147483648
      %v161 = vor.u32 1.1754944e-38, %v160
      %v162 = vsel %vm159, %v161, %v157
      %v163 = vmul.f32 1.0, %v162
      %165 = vset.pattern.permute.xlu0 0
      %166 = vperm.xlu0 %165, %v163
      %v167 = vpop.permute.xlu0 %166
      %169 = vset.pattern.permute.xlu0 1
      %170 = vperm.xlu0 %169, %v163
      %v171 = vpop.permute.xlu0 %170
      %v173 = vmul.f32 %v129, 0.0
      %175 = vset.pattern.permute.xlu0 0
      %176 = vperm.xlu0 %175, %v173
      %v177 = vpop.permute.xlu0 %176
      %s179 = smul.u32 %s124, 2654435769
      %s180 = sxor.u32 %s106, %s179
      %s181 = sshrl.u32 %s180, 16
      %s182 = sxor.u32 %s180, %s181
      %s183 = smul.u32 %s182, 2146121005
      %s184 = sshrl.u32 %s183, 15
      %s185 = sxor.u32 %s183, %s184
      %s186 = smul.u32 %s185, 2221713035
      %s187 = sshrl.u32 %s186, 16
      %s188 = sxor.u32 %s186, %s187
      %v189 = vpack.c.bf16 %v127, %v127
      %190 = vst [vmem:[#allocation4] sm:$0xf] %v189
      %v191 = vld [vmem:[#allocation2] sm:$0xff]
      %v192 = vpack.c.bf16 %v191, %v191
      %193 = vst [vmem:[#allocation4 + $0x4] sm:$0xf] %v192
      %s194 = sld [smem:[#allocation6 + %s124]]
      %v195 = vld [vmem:[#allocation2] sm:$0xff]
      %v196 = vld [vmem:[#allocation3] sm:$0xff]
      // While loop
      $region73: #{lemode2_forward.1} parent=69 // loop_pre_header
        _
      $region74: #{lemode2_forward.1} parent=69 // loop_header
        %s198 = sphi 0, %s200
        %p199 = scmp.ge.s32.totalorder %s198, %s194
        %v203 = vphi %v195, %v1430
        %v204 = vphi %v196, %v1432
      $region75: #{lemode2_forward.1} parent=69 // loop_header_branch
        %202 = sbr.rel (%p199) target = $region79
      $region76: #{lemode2_forward.1} parent=69 // loop_body
        %s205 = sadd.s32 %s198, 1
        %s206 = smul.u32 %s205, 2246822507
        %s207 = sxor.u32 %s188, %s206
        %s208 = sshrl.u32 %s207, 16
        %s209 = sxor.u32 %s207, %s208
        %s210 = smul.u32 %s209, 2146121005
        %s211 = sshrl.u32 %s210, 15
        %s212 = sxor.u32 %s210, %s211
        %s213 = smul.u32 %s212, 2221713035
        %s214 = sshrl.u32 %s213, 16
        %s215 = sxor.u32 %s213, %s214
        %v216 = vstv %s215
        %v217 = vadd.s32 %v116, %v216
        %v218 = vshrl.u32 %v217, 16
        %v219 = vxor.u32 %v217, %v218
        %v220 = vmul.u32 %v219, 2146121005
        %v221 = vshrl.u32 %v220, 15
        %v222 = vxor.u32 %v220, %v221
        %v223 = vmul.u32 %v222, 2221713035
        %v224 = vshrl.u32 %v223, 16
        %v225 = vxor.u32 %v223, %v224
        %v226 = vxor.u32 %v225, 1757159915
        %v227 = vshrl.u32 %v226, 16
        %v228 = vxor.u32 %v226, %v227
        %v229 = vmul.u32 %v228, 2146121005
        %v230 = vshrl.u32 %v229, 15
        %v231 = vxor.u32 %v229, %v230
        %v232 = vmul.u32 %v231, 2221713035
        %v233 = vshrl.u32 %v232, 16
        %v234 = vxor.u32 %v232, %v233
        %v235 = vshrl.u32 %v225, 9
        %v236 = vor.u32 %v235, 1065353216
        %v238 = vsub.f32 %v236, 1.0
        %v239 = vsub.f32 1.0, %v238
        %v240 = vshrl.u32 %v234, 9
        %v241 = vor.u32 %v240, 1065353216
        %v243 = vsub.f32 %v241, 1.0
        %v244 = vlog2.pop %v239
        %v245 = vmul.f32 %v244, 0.6931472
        %v246 = vmul.f32 %v245, -2.0
        %v247 = vrsqrt.pop %v246
        %v248 = vmul.f32 %v247, %v246
        %v249 = vmul.f32 %v248, %v247
        %v250 = vmul.f32 0.5, %v249
        %v251 = vsub.f32 1.5, %v250
        %v252 = vmul.f32 %v247, %v251
        %v253 = vmul.f32 %v246, %v252
        %vm254 = vcmp.eq.f32.partialorder %v246, inf
        %v255 = vsel %vm254, %v246, %v253
        %vm256 = vcmp.eq.f32.partialorder %v246, 0.0
        %v257 = vand.u32 %v246, 2147483648
        %v258 = vsel %vm256, %v257, %v255
        %v259 = vmul.f32 %v243, 6.2831855
        %v260 = vand.u32 2147483647, %v259
        %vm261 = vcmp.le.f32.partialorder %v260, 0.7853982
        %vm262 = vcmp.lt.s32.totalorder %v259, 0
        %v263 = vand.u32 %v259, 2139095040
        %v264 = vshrl.u32 %v263, 23
        %v265 = vsub.s32 %v264, 127
        %v266 = vand.u32 2147483647, %v259
        %v267 = vand.u32 %v266, 8388607
        %v268 = vor.u32 %v267, 8388608
        %v269 = vsub.s32 0, %v268
        %v270 = vadd.s32 %v265, 1
        %vm271 = vcmp.gt.s32.totalorder %v270, 0
        %v272 = vsel %vm271, %v270, 0
        %v273 = vshrl.u32 %v272, 5
        %v274 = vand.u32 %v272, 31
        %v275 = vsub.s32 32, %v274
        %v276 = vshrl.u32 683565275, %v275
        %v277 = vshll.u32 683565275, %v274
        %v278 = vshrl.u32 2475754826, %v275
        %v279 = vor.u32 %v277, %v278
        %v280 = vshll.u32 2475754826, %v274
        %v281 = vshrl.u32 2131351028, %v275
        %v282 = vor.u32 %v280, %v281
        %v283 = vshll.u32 2131351028, %v274
        %v284 = vshrl.u32 2102212464, %v275
        %v285 = vor.u32 %v283, %v284
        %v286 = vshll.u32 2102212464, %v274
        %v287 = vshrl.u32 920167782, %v275
        %v288 = vor.u32 %v286, %v287
        %v289 = vshll.u32 920167782, %v274
        %v290 = vshrl.u32 1326507024, %v275
        %v291 = vor.u32 %v289, %v290
        %vm292 = vcmp.lt.s32.totalorder %v273, 1
        %vm293 = vcmp.lt.s32.totalorder %v273, 2
        %vm294 = vcmp.lt.s32.totalorder %v273, 3
        %vm295 = vcmp.lt.s32.totalorder %v273, 4
        %v296 = vsel %vm292, %v276, %v279
        %v297 = vsel %vm295, %v285, 2102212464
        %v298 = vsel %vm294, %v282, %v297
        %v299 = vsel %vm293, %v296, %v298
        %v300 = vsel %vm292, %v279, %v282
        %v301 = vsel %vm295, %v288, 920167782
        %v302 = vsel %vm294, %v285, %v301
        %v303 = vsel %vm293, %v300, %v302
        %v304 = vsel %vm292, %v282, %v285
        %v305 = vsel %vm295, %v291, 1326507024
        %v306 = vsel %vm294, %v288, %v305
        %v307 = vsel %vm293, %v304, %v306
        %v308 = vshll.u32 %v268, 8
        %v309 = vand.u32 %v308, 65535
        %v310 = vshrl.u32 %v308, 16
        %v311 = vand.u32 %v307, 65535
        %v312 = vshrl.u32 %v307, 16
        %v313 = vmul.u32 %v309, %v311
        %v314 = vmul.u32 %v309, %v312
        %v315 = vmul.u32 %v310, %v311
        %v316 = vmul.u32 %v310, %v312
        %v317 = vshll.u32 %v314, 16
        %v318 = vshrl.u32 %v314, 16
        %v319 = vshll.u32 %v315, 16
        %v320 = vshrl.u32 %v315, 16
        %vm321 = vc.u32 %v313, %v317
        %v322 = vsel %vm321, 1, 0
        %v323 = vadd.s32 %v313, %v317
        %v324 = vadd.s32 %v316, %v322
        %vm325 = vc.u32 %v323, %v319
        %v326 = vsel %vm325, 1, 0
        %v327 = vadd.s32 %v323, %v319
        %v328 = vadd.s32 %v324, %v326
        %v329 = vadd.s32 %v328, %v318
        %v330 = vadd.s32 %v329, %v320
        %v331 = vand.u32 %v308, 65535
        %v332 = vshrl.u32 %v308, 16
        %v333 = vand.u32 %v303, 65535
        %v334 = vshrl.u32 %v303, 16
        %v335 = vmul.u32 %v331, %v333
        %v336 = vmul.u32 %v331, %v334
        %v337 = vmul.u32 %v332, %v333
        %v338 = vmul.u32 %v332, %v334
        %v339 = vshll.u32 %v336, 16
        %v340 = vshrl.u32 %v336, 16
        %v341 = vshll.u32 %v337, 16
        %v342 = vshrl.u32 %v337, 16
        %vm343 = vc.u32 %v335, %v339
        %v344 = vsel %vm343, 1, 0
        %v345 = vadd.s32 %v335, %v339
        %v346 = vadd.s32 %v338, %v344
        %vm347 = vc.u32 %v345, %v341
        %v348 = vsel %vm347, 1, 0
        %v349 = vadd.s32 %v345, %v341
        %v350 = vadd.s32 %v346, %v348
        %v351 = vadd.s32 %v350, %v340
        %v352 = vadd.s32 %v351, %v342
        %v353 = vmul.u32 %v308, %v299
        %v354 = vadd.s32 %v330, %v349
        %vm355 = vc.u32 %v330, %v349
        %v356 = vadd.s32 %v352, 1
        %v357 = vsel %vm355, %v356, %v352
        %v358 = vadd.s32 %v353, %v357
        %v359 = vadd.s32 %v358, 536870912
        %v360 = vshrl.u32 %v359, 30
        %v361 = vshll.u32 %v360, 30
        %v362 = vsub.s32 %v358, %v361
        %vm363 = vcmp.lt.s32.totalorder %v362, 0
        %v364 = vsub.s32 0, %v362
        %v365 = vsel %vm363, %v364, %v362
        %v366 = vclz %v365
        %v367 = vsub.s32 %v366, 2
        %vm368 = vcmp.gt.s32.totalorder 0, %v367
        %v369 = vsel %vm368, 0, %v367
        %v370 = vsub.s32 32, %v369
        %v371 = vshll.u32 %v362, %v369
        %v372 = vshrl.u32 %v354, %v370
        %v373 = vor.u32 %v371, %v372
        %v374 = vsub.s32 4294967266, %v369
        %v375 = vadd.s32 %v374, 127
        %v376 = vshll.u32 %v375, 23
        %v377 = vor.u32 4788187, %v376
        %v378 = vand.u32 2147483647, %v377
        %v380 = vcvt.s32.f32 %v373
        %v381 = vmul.f32 %v380, %v378
        %v382 = vxor.u32 %v381, 2147483648
        %v383 = vsel %vm262, %v382, %v381
        %v384 = vsub.s32 4, %v360
        %v385 = vsel %vm262, %v384, %v360
        %v386 = vsel %vm261, %v259, %v383
        %v387 = vsel %vm261, 0, %v385
        %v388 = vmul.f32 %v386, %v386
        %v389 = vmul.f32 %v388, -0.001358992
        %v390 = vadd.f32 %v389, 0.041655596
        %v391 = vmul.f32 %v388, %v390
        %v392 = vadd.f32 %v391, -0.4999988
        %v393 = vmul.f32 %v388, %v392
        %v394 = vadd.f32 1.0, %v393
        %v395 = vmul.f32 %v386, %v386
        %v396 = vmul.f32 %v395, -0.00019511016
        %v397 = vadd.f32 %v396, 0.008332121
        %v398 = vmul.f32 %v395, %v397
        %v399 = vadd.f32 %v398, -0.16666654
        %v400 = vmul.f32 %v395, %v399
        %v401 = vadd.f32 %v400, 1.0
        %v402 = vmul.f32 %v401, %v386
        %vm403 = vweird.f32 %v259
        %v404 = vand.u32 %v387, 3
        %vm405 = vcmp.lt.s32.totalorder %v404, 2
        %vm406 = vcmp.eq.s32.totalorder %v404, 0
        %v407 = vxor.u32 %v402, 2147483648
        %v408 = vsel %vm406, %v394, %v407
        %vm409 = vcmp.eq.s32.totalorder %v404, 2
        %v410 = vxor.u32 %v394, 2147483648
        %v411 = vsel %vm409, %v410, %v402
        %v412 = vsel %vm405, %v408, %v411
        %v413 = vsel %vm403, nan, %v412
        %v414 = vmul.f32 %v258, %v413
        %v415 = vand.u32 2147483647, %v259
        %vm416 = vcmp.le.f32.partialorder %v415, 0.7853982
        %vm417 = vcmp.lt.s32.totalorder %v259, 0
        %v418 = vand.u32 %v259, 2139095040
        %v419 = vshrl.u32 %v418, 23
        %v420 = vsub.s32 %v419, 127
        %v421 = vand.u32 2147483647, %v259
        %v422 = vand.u32 %v421, 8388607
        %v423 = vor.u32 %v422, 8388608
        %v424 = vsub.s32 0, %v423
        %v425 = vadd.s32 %v420, 1
        %vm426 = vcmp.gt.s32.totalorder %v425, 0
        %v427 = vsel %vm426, %v425, 0
        %v428 = vshrl.u32 %v427, 5
        %v429 = vand.u32 %v427, 31
        %v430 = vsub.s32 32, %v429
        %v431 = vshrl.u32 683565275, %v430
        %v432 = vshll.u32 683565275, %v429
        %v433 = vshrl.u32 2475754826, %v430
        %v434 = vor.u32 %v432, %v433
        %v435 = vshll.u32 2475754826, %v429
        %v436 = vshrl.u32 2131351028, %v430
        %v437 = vor.u32 %v435, %v436
        %v438 = vshll.u32 2131351028, %v429
        %v439 = vshrl.u32 2102212464, %v430
        %v440 = vor.u32 %v438, %v439
        %v441 = vshll.u32 2102212464, %v429
        %v442 = vshrl.u32 920167782, %v430
        %v443 = vor.u32 %v441, %v442
        %v444 = vshll.u32 920167782, %v429
        %v445 = vshrl.u32 1326507024, %v430
        %v446 = vor.u32 %v444, %v445
        %vm447 = vcmp.lt.s32.totalorder %v428, 1
        %vm448 = vcmp.lt.s32.totalorder %v428, 2
        %vm449 = vcmp.lt.s32.totalorder %v428, 3
        %vm450 = vcmp.lt.s32.totalorder %v428, 4
        %v451 = vsel %vm447, %v431, %v434
        %v452 = vsel %vm450, %v440, 2102212464
        %v453 = vsel %vm449, %v437, %v452
        %v454 = vsel %vm448, %v451, %v453
        %v455 = vsel %vm447, %v434, %v437
        %v456 = vsel %vm450, %v443, 920167782
        %v457 = vsel %vm449, %v440, %v456
        %v458 = vsel %vm448, %v455, %v457
        %v459 = vsel %vm447, %v437, %v440
        %v460 = vsel %vm450, %v446, 1326507024
        %v461 = vsel %vm449, %v443, %v460
        %v462 = vsel %vm448, %v459, %v461
        %v463 = vshll.u32 %v423, 8
        %v464 = vand.u32 %v463, 65535
        %v465 = vshrl.u32 %v463, 16
        %v466 = vand.u32 %v462, 65535
        %v467 = vshrl.u32 %v462, 16
        %v468 = vmul.u32 %v464, %v466
        %v469 = vmul.u32 %v464, %v467
        %v470 = vmul.u32 %v465, %v466
        %v471 = vmul.u32 %v465, %v467
        %v472 = vshll.u32 %v469, 16
        %v473 = vshrl.u32 %v469, 16
        %v474 = vshll.u32 %v470, 16
        %v475 = vshrl.u32 %v470, 16
        %vm476 = vc.u32 %v468, %v472
        %v477 = vsel %vm476, 1, 0
        %v478 = vadd.s32 %v468, %v472
        %v479 = vadd.s32 %v471, %v477
        %vm480 = vc.u32 %v478, %v474
        %v481 = vsel %vm480, 1, 0
        %v482 = vadd.s32 %v478, %v474
        %v483 = vadd.s32 %v479, %v481
        %v484 = vadd.s32 %v483, %v473
        %v485 = vadd.s32 %v484, %v475
        %v486 = vand.u32 %v463, 65535
        %v487 = vshrl.u32 %v463, 16
        %v488 = vand.u32 %v458, 65535
        %v489 = vshrl.u32 %v458, 16
        %v490 = vmul.u32 %v486, %v488
        %v491 = vmul.u32 %v486, %v489
        %v492 = vmul.u32 %v487, %v488
        %v493 = vmul.u32 %v487, %v489
        %v494 = vshll.u32 %v491, 16
        %v495 = vshrl.u32 %v491, 16
        %v496 = vshll.u32 %v492, 16
        %v497 = vshrl.u32 %v492, 16
        %vm498 = vc.u32 %v490, %v494
        %v499 = vsel %vm498, 1, 0
        %v500 = vadd.s32 %v490, %v494
        %v501 = vadd.s32 %v493, %v499
        %vm502 = vc.u32 %v500, %v496
        %v503 = vsel %vm502, 1, 0
        %v504 = vadd.s32 %v500, %v496
        %v505 = vadd.s32 %v501, %v503
        %v506 = vadd.s32 %v505, %v495
        %v507 = vadd.s32 %v506, %v497
        %v508 = vmul.u32 %v463, %v454
        %v509 = vadd.s32 %v485, %v504
        %vm510 = vc.u32 %v485, %v504
        %v511 = vadd.s32 %v507, 1
        %v512 = vsel %vm510, %v511, %v507
        %v513 = vadd.s32 %v508, %v512
        %v514 = vadd.s32 %v513, 536870912
        %v515 = vshrl.u32 %v514, 30
        %v516 = vshll.u32 %v515, 30
        %v517 = vsub.s32 %v513, %v516
        %vm518 = vcmp.lt.s32.totalorder %v517, 0
        %v519 = vsub.s32 0, %v517
        %v520 = vsel %vm518, %v519, %v517
        %v521 = vclz %v520
        %v522 = vsub.s32 %v521, 2
        %vm523 = vcmp.gt.s32.totalorder 0, %v522
        %v524 = vsel %vm523, 0, %v522
        %v525 = vsub.s32 32, %v524
        %v526 = vshll.u32 %v517, %v524
        %v527 = vshrl.u32 %v509, %v525
        %v528 = vor.u32 %v526, %v527
        %v529 = vsub.s32 4294967266, %v524
        %v530 = vadd.s32 %v529, 127
        %v531 = vshll.u32 %v530, 23
        %v532 = vor.u32 4788187, %v531
        %v533 = vand.u32 2147483647, %v532
        %v535 = vcvt.s32.f32 %v528
        %v536 = vmul.f32 %v535, %v533
        %v537 = vxor.u32 %v536, 2147483648
        %v538 = vsel %vm417, %v537, %v536
        %v539 = vsub.s32 4, %v515
        %v540 = vsel %vm417, %v539, %v515
        %v541 = vsel %vm416, %v259, %v538
        %v542 = vsel %vm416, 0, %v540
        %v543 = vmul.f32 %v541, %v541
        %v544 = vmul.f32 %v543, -0.001358992
        %v545 = vadd.f32 %v544, 0.041655596
        %v546 = vmul.f32 %v543, %v545
        %v547 = vadd.f32 %v546, -0.4999988
        %v548 = vmul.f32 %v543, %v547
        %v549 = vadd.f32 1.0, %v548
        %v550 = vmul.f32 %v541, %v541
        %v551 = vmul.f32 %v550, -0.00019511016
        %v552 = vadd.f32 %v551, 0.008332121
        %v553 = vmul.f32 %v550, %v552
        %v554 = vadd.f32 %v553, -0.16666654
        %v555 = vmul.f32 %v550, %v554
        %v556 = vadd.f32 %v555, 1.0
        %v557 = vmul.f32 %v556, %v541
        %vm558 = vweird.f32 %v259
        %v559 = vadd.s32 %v542, 3
        %v560 = vand.u32 %v559, 3
        %vm561 = vcmp.lt.s32.totalorder %v560, 2
        %vm562 = vcmp.eq.s32.totalorder %v560, 0
        %v563 = vxor.u32 %v557, 2147483648
        %v564 = vsel %vm562, %v549, %v563
        %vm565 = vcmp.eq.s32.totalorder %v560, 2
        %v566 = vxor.u32 %v549, 2147483648
        %v567 = vsel %vm565, %v566, %v557
        %v568 = vsel %vm561, %v564, %v567
        %v569 = vsel %vm558, nan, %v568
        %v570 = vmul.f32 %v258, %v569
        %572 = vrot.lane.b32.xlu0 %v570, 64
        %v573 = vpop.permute.xlu0 %572
        %vm575 = vcmask 523264
        %v576 = vsel %vm575, %v414, %v573
        %v577 = vpack.c.bf16 %v576, %v576
        %v578 = vld [vmem:[%s12] sm:$0xff]
        %v579 = vld [vmem:[%s12 + $0x8] sm:$0xff]
        %v580 = vld [vmem:[%s12 + $0x10] sm:$0xff]
        %v581 = vld [vmem:[%s12 + $0x18] sm:$0xff]
        %v582 = vld [vmem:[%s12 + $0x20] sm:$0xff]
        %v583 = vld [vmem:[%s12 + $0x28] sm:$0xff]
        %v584 = vld [vmem:[%s12 + $0x30] sm:$0xff]
        %v585 = vld [vmem:[%s12 + $0x38] sm:$0xff]
        %v586 = vld [vmem:[%s12 + $0x40] sm:$0xff]
        %v587 = vld [vmem:[%s12 + $0x48] sm:$0xff]
        %v588 = vld [vmem:[%s12 + $0x50] sm:$0xff]
        %v589 = vld [vmem:[%s12 + $0x58] sm:$0xff]
        %v590 = vld [vmem:[%s12 + $0x60] sm:$0xff]
        %v591 = vld [vmem:[%s12 + $0x68] sm:$0xff]
        %v592 = vld [vmem:[%s12 + $0x70] sm:$0xff]
        %v593 = vld [vmem:[%s12 + $0x78] sm:$0xff]
        %v594 = vld [vmem:[%s13] sm:$0x3]
        %v596 = vperm.slane %v594, 0
        %v597 = vperm.slane %v594, 1
        %v616 = vunpack.c.l.b16 %v578
        %v617 = vunpack.c.h.b16 %v578
        %v618 = vunpack.c.l.b16 %v579
        %v619 = vunpack.c.h.b16 %v579
        %v620 = vunpack.c.l.b16 %v580
        %v621 = vunpack.c.h.b16 %v580
        %v622 = vunpack.c.l.b16 %v581
        %v623 = vunpack.c.h.b16 %v581
        %v624 = vunpack.c.l.b16 %v582
        %v625 = vunpack.c.h.b16 %v582
        %v626 = vunpack.c.l.b16 %v583
        %v627 = vunpack.c.h.b16 %v583
        %v628 = vunpack.c.l.b16 %v584
        %v629 = vunpack.c.h.b16 %v584
        %v630 = vunpack.c.l.b16 %v585
        %v631 = vunpack.c.h.b16 %v585
        %v632 = vunpack.c.l.b16 %v586
        %v633 = vunpack.c.h.b16 %v586
        %v634 = vunpack.c.l.b16 %v587
        %v635 = vunpack.c.h.b16 %v587
        %v636 = vunpack.c.l.b16 %v588
        %v637 = vunpack.c.h.b16 %v588
        %v638 = vunpack.c.l.b16 %v589
        %v639 = vunpack.c.h.b16 %v589
        %v640 = vunpack.c.l.b16 %v590
        %v641 = vunpack.c.h.b16 %v590
        %v642 = vunpack.c.l.b16 %v591
        %v643 = vunpack.c.h.b16 %v591
        %v644 = vunpack.c.l.b16 %v592
        %v645 = vunpack.c.h.b16 %v592
        %v646 = vunpack.c.l.b16 %v593
        %v647 = vunpack.c.h.b16 %v593
        %v648 = vpack.c.b16 %v618, %v616
        %v649 = vpack.c.b16 %v619, %v617
        %v650 = vpack.c.b16 %v622, %v620
        %v651 = vpack.c.b16 %v623, %v621
        %v652 = vpack.c.b16 %v626, %v624
        %v653 = vpack.c.b16 %v627, %v625
        %v654 = vpack.c.b16 %v630, %v628
        %v655 = vpack.c.b16 %v631, %v629
        %v656 = vpack.c.b16 %v634, %v632
        %v657 = vpack.c.b16 %v635, %v633
        %v658 = vpack.c.b16 %v638, %v636
        %v659 = vpack.c.b16 %v639, %v637
        %v660 = vpack.c.b16 %v642, %v640
        %v661 = vpack.c.b16 %v643, %v641
        %v662 = vpack.c.b16 %v646, %v644
        %v663 = vpack.c.b16 %v647, %v645
        %680 = vmatpush.bf16.msra.mxu0 %v662
        %681 = vmatpush.bf16.msra.mxu0 %v660
        %682 = vmatpush.bf16.msra.mxu0 %v658
        %683 = vmatpush.bf16.msra.mxu0 %v656
        %684 = vmatpush.bf16.msra.mxu0 %v654
        %685 = vmatpush.bf16.msra.mxu0 %v652
        %686 = vmatpush.bf16.msra.mxu0 %v650
        %687 = vmatpush.bf16.msra.mxu0 %v648
        %688 = vmatmul.bf16.gmra.mxu0 %v577
        %v689 = vpop.f32.mrf.mxu0
        %v690 = vadd.f32 %v596, %v689
        %v691 = vpop.f32.mrf.mxu0
        %692 = vdwg.mxu0
        %693 = vmatpush.bf16.msra.mxu0 %v663
        %694 = vmatpush.bf16.msra.mxu0 %v661
        %695 = vmatpush.bf16.msra.mxu0 %v659
        %696 = vmatpush.bf16.msra.mxu0 %v657
        %697 = vmatpush.bf16.msra.mxu0 %v655
        %698 = vmatpush.bf16.msra.mxu0 %v653
        %699 = vmatpush.bf16.msra.mxu0 %v651
        %700 = vmatpush.bf16.msra.mxu0 %v649
        %701 = vmatmul.bf16.gmra.mxu0 %v577
        %v702 = vpop.f32.mrf.mxu0
        %v703 = vadd.f32 %v597, %v702
        %v704 = vpop.f32.mrf.mxu0
        %705 = vdwg.mxu0
        %v706 = vtanh.pop %v690
        %v707 = vtanh.pop %v703
        %v708 = vld [vmem:[#allocation4] sm:$0xff]
        %v709 = vld [vmem:[#allocation8] sm:$0xff]
        %v710 = vld [vmem:[#allocation8 + $0x8] sm:$0xff]
        %v711 = vld [vmem:[#allocation8 + $0x10] sm:$0xff]
        %v712 = vld [vmem:[#allocation8 + $0x18] sm:$0xff]
        %v713 = vld [vmem:[#allocation8 + $0x20] sm:$0xff]
        %v714 = vld [vmem:[#allocation8 + $0x28] sm:$0xff]
        %v715 = vld [vmem:[#allocation8 + $0x30] sm:$0xff]
        %v716 = vld [vmem:[#allocation8 + $0x38] sm:$0xff]
        %v717 = vld [vmem:[#allocation8 + $0x40] sm:$0xff]
        %v718 = vld [vmem:[#allocation8 + $0x48] sm:$0xff]
        %v719 = vld [vmem:[#allocation8 + $0x50] sm:$0xff]
        %v720 = vld [vmem:[#allocation8 + $0x58] sm:$0xff]
        %v721 = vld [vmem:[#allocation8 + $0x60] sm:$0xff]
        %v722 = vld [vmem:[#allocation8 + $0x68] sm:$0xff]
        %v723 = vld [vmem:[#allocation8 + $0x70] sm:$0xff]
        %v724 = vld [vmem:[#allocation8 + $0x78] sm:$0xff]
        %v725 = vld [vmem:[#allocation8 + $0x80] sm:$0xff]
        %v726 = vld [vmem:[#allocation8 + $0x88] sm:$0xff]
        %v727 = vld [vmem:[#allocation8 + $0x90] sm:$0xff]
        %v728 = vld [vmem:[#allocation8 + $0x98] sm:$0xff]
        %v729 = vld [vmem:[#allocation8 + $0xa0] sm:$0xff]
        %v730 = vld [vmem:[#allocation8 + $0xa8] sm:$0xff]
        %v731 = vld [vmem:[#allocation8 + $0xb0] sm:$0xff]
        %v732 = vld [vmem:[#allocation8 + $0xb8] sm:$0xff]
        %v733 = vld [vmem:[#allocation8 + $0xc0] sm:$0xff]
        %v734 = vld [vmem:[#allocation8 + $0xc8] sm:$0xff]
        %v735 = vld [vmem:[#allocation8 + $0xd0] sm:$0xff]
        %v736 = vld [vmem:[#allocation8 + $0xd8] sm:$0xff]
        %v737 = vld [vmem:[#allocation8 + $0xe0] sm:$0xff]
        %v738 = vld [vmem:[#allocation8 + $0xe8] sm:$0xff]
        %v739 = vld [vmem:[#allocation8 + $0xf0] sm:$0xff]
        %v740 = vld [vmem:[#allocation8 + $0xf8] sm:$0xff]
        %v741 = vld [vmem:[#allocation8 + $0x100] sm:$0xff]
        %v742 = vld [vmem:[#allocation8 + $0x108] sm:$0xff]
        %v743 = vld [vmem:[#allocation8 + $0x110] sm:$0xff]
        %v744 = vld [vmem:[#allocation8 + $0x118] sm:$0xff]
        %v745 = vld [vmem:[#allocation8 + $0x120] sm:$0xff]
        %v746 = vld [vmem:[#allocation8 + $0x128] sm:$0xff]
        %v747 = vld [vmem:[#allocation8 + $0x130] sm:$0xff]
        %v748 = vld [vmem:[#allocation8 + $0x138] sm:$0xff]
        %v749 = vld [vmem:[#allocation8 + $0x140] sm:$0xff]
        %v750 = vld [vmem:[#allocation8 + $0x148] sm:$0xff]
        %v751 = vld [vmem:[#allocation8 + $0x150] sm:$0xff]
        %v752 = vld [vmem:[#allocation8 + $0x158] sm:$0xff]
        %v753 = vld [vmem:[#allocation8 + $0x160] sm:$0xff]
        %v754 = vld [vmem:[#allocation8 + $0x168] sm:$0xff]
        %v755 = vld [vmem:[#allocation8 + $0x170] sm:$0xff]
        %v756 = vld [vmem:[#allocation8 + $0x178] sm:$0xff]
        %v757 = vld [vmem:[#allocation8 + $0x180] sm:$0xff]
        %v758 = vld [vmem:[#allocation8 + $0x188] sm:$0xff]
        %v759 = vld [vmem:[#allocation8 + $0x190] sm:$0xff]
        %v760 = vld [vmem:[#allocation8 + $0x198] sm:$0xff]
        %v761 = vld [vmem:[#allocation8 + $0x1a0] sm:$0xff]
        %v762 = vld [vmem:[#allocation8 + $0x1a8] sm:$0xff]
        %v763 = vld [vmem:[#allocation8 + $0x1b0] sm:$0xff]
        %v764 = vld [vmem:[#allocation8 + $0x1b8] sm:$0xff]
        %v765 = vld [vmem:[#allocation8 + $0x1c0] sm:$0xff]
        %v766 = vld [vmem:[#allocation8 + $0x1c8] sm:$0xff]
        %v767 = vld [vmem:[#allocation8 + $0x1d0] sm:$0xff]
        %v768 = vld [vmem:[#allocation8 + $0x1d8] sm:$0xff]
        %v769 = vld [vmem:[#allocation8 + $0x1e0] sm:$0xff]
        %v770 = vld [vmem:[#allocation8 + $0x1e8] sm:$0xff]
        %v771 = vld [vmem:[#allocation8 + $0x1f0] sm:$0xff]
        %v772 = vld [vmem:[#allocation8 + $0x1f8] sm:$0xff]
        %v773 = vld [vmem:[%s5] sm:$0xf]
        %v775 = vperm.slane %v773, 0
        %v776 = vperm.slane %v773, 1
        %v777 = vperm.slane %v773, 2
        %v778 = vperm.slane %v773, 3
        %v784 = vunpack.c.l.b16 %v708
        %v785 = vunpack.c.h.b16 %v708
        %v786 = vpack.c.b16 %v784, %v784
        %v787 = vpack.c.b16 %v785, %v785
        %v854 = vunpack.c.l.b16 %v709
        %v855 = vunpack.c.h.b16 %v709
        %v856 = vunpack.c.l.b16 %v710
        %v857 = vunpack.c.h.b16 %v710
        %v858 = vunpack.c.l.b16 %v711
        %v859 = vunpack.c.h.b16 %v711
        %v860 = vunpack.c.l.b16 %v712
        %v861 = vunpack.c.h.b16 %v712
        %v862 = vunpack.c.l.b16 %v713
        %v863 = vunpack.c.h.b16 %v713
        %v864 = vunpack.c.l.b16 %v714
        %v865 = vunpack.c.h.b16 %v714
        %v866 = vunpack.c.l.b16 %v715
        %v867 = vunpack.c.h.b16 %v715
        %v868 = vunpack.c.l.b16 %v716
        %v869 = vunpack.c.h.b16 %v716
        %v870 = vunpack.c.l.b16 %v717
        %v871 = vunpack.c.h.b16 %v717
        %v872 = vunpack.c.l.b16 %v718
        %v873 = vunpack.c.h.b16 %v718
        %v874 = vunpack.c.l.b16 %v719
        %v875 = vunpack.c.h.b16 %v719
        %v876 = vunpack.c.l.b16 %v720
        %v877 = vunpack.c.h.b16 %v720
        %v878 = vunpack.c.l.b16 %v721
        %v879 = vunpack.c.h.b16 %v721
        %v880 = vunpack.c.l.b16 %v722
        %v881 = vunpack.c.h.b16 %v722
        %v882 = vunpack.c.l.b16 %v723
        %v883 = vunpack.c.h.b16 %v723
        %v884 = vunpack.c.l.b16 %v724
        %v885 = vunpack.c.h.b16 %v724
        %v886 = vunpack.c.l.b16 %v725
        %v887 = vunpack.c.h.b16 %v725
        %v888 = vunpack.c.l.b16 %v726
        %v889 = vunpack.c.h.b16 %v726
        %v890 = vunpack.c.l.b16 %v727
        %v891 = vunpack.c.h.b16 %v727
        %v892 = vunpack.c.l.b16 %v728
        %v893 = vunpack.c.h.b16 %v728
        %v894 = vunpack.c.l.b16 %v729
        %v895 = vunpack.c.h.b16 %v729
        %v896 = vunpack.c.l.b16 %v730
        %v897 = vunpack.c.h.b16 %v730
        %v898 = vunpack.c.l.b16 %v731
        %v899 = vunpack.c.h.b16 %v731
        %v900 = vunpack.c.l.b16 %v732
        %v901 = vunpack.c.h.b16 %v732
        %v902 = vunpack.c.l.b16 %v733
        %v903 = vunpack.c.h.b16 %v733
        %v904 = vunpack.c.l.b16 %v734
        %v905 = vunpack.c.h.b16 %v734
        %v906 = vunpack.c.l.b16 %v735
        %v907 = vunpack.c.h.b16 %v735
        %v908 = vunpack.c.l.b16 %v736
        %v909 = vunpack.c.h.b16 %v736
        %v910 = vunpack.c.l.b16 %v737
        %v911 = vunpack.c.h.b16 %v737
        %v912 = vunpack.c.l.b16 %v738
        %v913 = vunpack.c.h.b16 %v738
        %v914 = vunpack.c.l.b16 %v739
        %v915 = vunpack.c.h.b16 %v739
        %v916 = vunpack.c.l.b16 %v740
        %v917 = vunpack.c.h.b16 %v740
        %v918 = vunpack.c.l.b16 %v741
        %v919 = vunpack.c.h.b16 %v741
        %v920 = vunpack.c.l.b16 %v742
        %v921 = vunpack.c.h.b16 %v742
        %v922 = vunpack.c.l.b16 %v743
        %v923 = vunpack.c.h.b16 %v743
        %v924 = vunpack.c.l.b16 %v744
        %v925 = vunpack.c.h.b16 %v744
        %v926 = vunpack.c.l.b16 %v745
        %v927 = vunpack.c.h.b16 %v745
        %v928 = vunpack.c.l.b16 %v746
        %v929 = vunpack.c.h.b16 %v746
        %v930 = vunpack.c.l.b16 %v747
        %v931 = vunpack.c.h.b16 %v747
        %v932 = vunpack.c.l.b16 %v748
        %v933 = vunpack.c.h.b16 %v748
        %v934 = vunpack.c.l.b16 %v749
        %v935 = vunpack.c.h.b16 %v749
        %v936 = vunpack.c.l.b16 %v750
        %v937 = vunpack.c.h.b16 %v750
        %v938 = vunpack.c.l.b16 %v751
        %v939 = vunpack.c.h.b16 %v751
        %v940 = vunpack.c.l.b16 %v752
        %v941 = vunpack.c.h.b16 %v752
        %v942 = vunpack.c.l.b16 %v753
        %v943 = vunpack.c.h.b16 %v753
        %v944 = vunpack.c.l.b16 %v754
        %v945 = vunpack.c.h.b16 %v754
        %v946 = vunpack.c.l.b16 %v755
        %v947 = vunpack.c.h.b16 %v755
        %v948 = vunpack.c.l.b16 %v756
        %v949 = vunpack.c.h.b16 %v756
        %v950 = vunpack.c.l.b16 %v757
        %v951 = vunpack.c.h.b16 %v757
        %v952 = vunpack.c.l.b16 %v758
        %v953 = vunpack.c.h.b16 %v758
        %v954 = vunpack.c.l.b16 %v759
        %v955 = vunpack.c.h.b16 %v759
        %v956 = vunpack.c.l.b16 %v760
        %v957 = vunpack.c.h.b16 %v760
        %v958 = vunpack.c.l.b16 %v761
        %v959 = vunpack.c.h.b16 %v761
        %v960 = vunpack.c.l.b16 %v762
        %v961 = vunpack.c.h.b16 %v762
        %v962 = vunpack.c.l.b16 %v763
        %v963 = vunpack.c.h.b16 %v763
        %v964 = vunpack.c.l.b16 %v764
        %v965 = vunpack.c.h.b16 %v764
        %v966 = vunpack.c.l.b16 %v765
        %v967 = vunpack.c.h.b16 %v765
        %v968 = vunpack.c.l.b16 %v766
        %v969 = vunpack.c.h.b16 %v766
        %v970 = vunpack.c.l.b16 %v767
        %v971 = vunpack.c.h.b16 %v767
        %v972 = vunpack.c.l.b16 %v768
        %v973 = vunpack.c.h.b16 %v768
        %v974 = vunpack.c.l.b16 %v769
        %v975 = vunpack.c.h.b16 %v769
        %v976 = vunpack.c.l.b16 %v770
        %v977 = vunpack.c.h.b16 %v770
        %v978 = vunpack.c.l.b16 %v771
        %v979 = vunpack.c.h.b16 %v771
        %v980 = vunpack.c.l.b16 %v772
        %v981 = vunpack.c.h.b16 %v772
        %v982 = vpack.c.b16 %v858, %v854
        %v983 = vpack.c.b16 %v859, %v855
        %v984 = vpack.c.b16 %v860, %v856
        %v985 = vpack.c.b16 %v861, %v857
        %v986 = vpack.c.b16 %v866, %v862
        %v987 = vpack.c.b16 %v867, %v863
        %v988 = vpack.c.b16 %v868, %v864
        %v989 = vpack.c.b16 %v869, %v865
        %v990 = vpack.c.b16 %v874, %v870
        %v991 = vpack.c.b16 %v875, %v871
        %v992 = vpack.c.b16 %v876, %v872
        %v993 = vpack.c.b16 %v877, %v873
        %v994 = vpack.c.b16 %v882, %v878
        %v995 = vpack.c.b16 %v883, %v879
        %v996 = vpack.c.b16 %v884, %v880
        %v997 = vpack.c.b16 %v885, %v881
        %v998 = vpack.c.b16 %v890, %v886
        %v999 = vpack.c.b16 %v891, %v887
        %v1000 = vpack.c.b16 %v892, %v888
        %v1001 = vpack.c.b16 %v893, %v889
        %v1002 = vpack.c.b16 %v898, %v894
        %v1003 = vpack.c.b16 %v899, %v895
        %v1004 = vpack.c.b16 %v900, %v896
        %v1005 = vpack.c.b16 %v901, %v897
        %v1006 = vpack.c.b16 %v906, %v902
        %v1007 = vpack.c.b16 %v907, %v903
        %v1008 = vpack.c.b16 %v908, %v904
        %v1009 = vpack.c.b16 %v909, %v905
        %v1010 = vpack.c.b16 %v914, %v910
        %v1011 = vpack.c.b16 %v915, %v911
        %v1012 = vpack.c.b16 %v916, %v912
        %v1013 = vpack.c.b16 %v917, %v913
        %v1014 = vpack.c.b16 %v922, %v918
        %v1015 = vpack.c.b16 %v923, %v919
        %v1016 = vpack.c.b16 %v924, %v920
        %v1017 = vpack.c.b16 %v925, %v921
        %v1018 = vpack.c.b16 %v930, %v926
        %v1019 = vpack.c.b16 %v931, %v927
        %v1020 = vpack.c.b16 %v932, %v928
        %v1021 = vpack.c.b16 %v933, %v929
        %v1022 = vpack.c.b16 %v938, %v934
        %v1023 = vpack.c.b16 %v939, %v935
        %v1024 = vpack.c.b16 %v940, %v936
        %v1025 = vpack.c.b16 %v941, %v937
        %v1026 = vpack.c.b16 %v946, %v942
        %v1027 = vpack.c.b16 %v947, %v943
        %v1028 = vpack.c.b16 %v948, %v944
        %v1029 = vpack.c.b16 %v949, %v945
        %v1030 = vpack.c.b16 %v954, %v950
        %v1031 = vpack.c.b16 %v955, %v951
        %v1032 = vpack.c.b16 %v956, %v952
        %v1033 = vpack.c.b16 %v957, %v953
        %v1034 = vpack.c.b16 %v962, %v958
        %v1035 = vpack.c.b16 %v963, %v959
        %v1036 = vpack.c.b16 %v964, %v960
        %v1037 = vpack.c.b16 %v965, %v961
        %v1038 = vpack.c.b16 %v970, %v966
        %v1039 = vpack.c.b16 %v971, %v967
        %v1040 = vpack.c.b16 %v972, %v968
        %v1041 = vpack.c.b16 %v973, %v969
        %v1042 = vpack.c.b16 %v978, %v974
        %v1043 = vpack.c.b16 %v979, %v975
        %v1044 = vpack.c.b16 %v980, %v976
        %v1045 = vpack.c.b16 %v981, %v977
        %1110 = vmatpush.bf16.msra.mxu0 %v1010
        %1111 = vmatpush.bf16.msra.mxu0 %v1006
        %1112 = vmatpush.bf16.msra.mxu0 %v1002
        %1113 = vmatpush.bf16.msra.mxu0 %v998
        %1114 = vmatpush.bf16.msra.mxu0 %v994
        %1115 = vmatpush.bf16.msra.mxu0 %v990
        %1116 = vmatpush.bf16.msra.mxu0 %v986
        %1117 = vmatpush.bf16.msra.mxu0 %v982
        %1118 = vmatmul.bf16.gmra.mxu0 %v786
        %v1119 = vpop.f32.mrf.mxu0
        %v1120 = vadd.f32 %v775, %v1119
        %v1121 = vpop.f32.mrf.mxu0
        %1122 = vdwg.mxu0
        %1123 = vmatpush.bf16.msra.mxu0 %v1042
        %1124 = vmatpush.bf16.msra.mxu0 %v1038
        %1125 = vmatpush.bf16.msra.mxu0 %v1034
        %1126 = vmatpush.bf16.msra.mxu0 %v1030
        %1127 = vmatpush.bf16.msra.mxu0 %v1026
        %1128 = vmatpush.bf16.msra.mxu0 %v1022
        %1129 = vmatpush.bf16.msra.mxu0 %v1018
        %1130 = vmatpush.bf16.msra.mxu0 %v1014
        %1131 = vmatmul.bf16.gmra.mxu0 %v787
        %v1132 = vpop.f32.mrf.mxu0
        %v1133 = vadd.f32 %v1120, %v1132
        %v1134 = vpop.f32.mrf.mxu0
        %1135 = vdwg.mxu0
        %1136 = vmatpush.bf16.msra.mxu0 %v1011
        %1137 = vmatpush.bf16.msra.mxu0 %v1007
        %1138 = vmatpush.bf16.msra.mxu0 %v1003
        %1139 = vmatpush.bf16.msra.mxu0 %v999
        %1140 = vmatpush.bf16.msra.mxu0 %v995
        %1141 = vmatpush.bf16.msra.mxu0 %v991
        %1142 = vmatpush.bf16.msra.mxu0 %v987
        %1143 = vmatpush.bf16.msra.mxu0 %v983
        %1144 = vmatmul.bf16.gmra.mxu0 %v786
        %v1145 = vpop.f32.mrf.mxu0
        %v1146 = vadd.f32 %v776, %v1145
        %v1147 = vpop.f32.mrf.mxu0
        %1148 = vdwg.mxu0
        %1149 = vmatpush.bf16.msra.mxu0 %v1043
        %1150 = vmatpush.bf16.msra.mxu0 %v1039
        %1151 = vmatpush.bf16.msra.mxu0 %v1035
        %1152 = vmatpush.bf16.msra.mxu0 %v1031
        %1153 = vmatpush.bf16.msra.mxu0 %v1027
        %1154 = vmatpush.bf16.msra.mxu0 %v1023
        %1155 = vmatpush.bf16.msra.mxu0 %v1019
        %1156 = vmatpush.bf16.msra.mxu0 %v1015
        %1157 = vmatmul.bf16.gmra.mxu0 %v787
        %v1158 = vpop.f32.mrf.mxu0
        %v1159 = vadd.f32 %v1146, %v1158
        %v1160 = vpop.f32.mrf.mxu0
        %1161 = vdwg.mxu0
        %1162 = vmatpush.bf16.msra.mxu0 %v1012
        %1163 = vmatpush.bf16.msra.mxu0 %v1008
        %1164 = vmatpush.bf16.msra.mxu0 %v1004
        %1165 = vmatpush.bf16.msra.mxu0 %v1000
        %1166 = vmatpush.bf16.msra.mxu0 %v996
        %1167 = vmatpush.bf16.msra.mxu0 %v992
        %1168 = vmatpush.bf16.msra.mxu0 %v988
        %1169 = vmatpush.bf16.msra.mxu0 %v984
        %1170 = vmatmul.bf16.gmra.mxu0 %v786
        %v1171 = vpop.f32.mrf.mxu0
        %v1172 = vadd.f32 %v777, %v1171
        %v1173 = vpop.f32.mrf.mxu0
        %1174 = vdwg.mxu0
        %1175 = vmatpush.bf16.msra.mxu0 %v1044
        %1176 = vmatpush.bf16.msra.mxu0 %v1040
        %1177 = vmatpush.bf16.msra.mxu0 %v1036
        %1178 = vmatpush.bf16.msra.mxu0 %v1032
        %1179 = vmatpush.bf16.msra.mxu0 %v1028
        %1180 = vmatpush.bf16.msra.mxu0 %v1024
        %1181 = vmatpush.bf16.msra.mxu0 %v1020
        %1182 = vmatpush.bf16.msra.mxu0 %v1016
        %1183 = vmatmul.bf16.gmra.mxu0 %v787
        %v1184 = vpop.f32.mrf.mxu0
        %v1185 = vadd.f32 %v1172, %v1184
        %v1186 = vpop.f32.mrf.mxu0
        %1187 = vdwg.mxu0
        %1188 = vmatpush.bf16.msra.mxu0 %v1013
        %1189 = vmatpush.bf16.msra.mxu0 %v1009
        %1190 = vmatpush.bf16.msra.mxu0 %v1005
        %1191 = vmatpush.bf16.msra.mxu0 %v1001
        %1192 = vmatpush.bf16.msra.mxu0 %v997
        %1193 = vmatpush.bf16.msra.mxu0 %v993
        %1194 = vmatpush.bf16.msra.mxu0 %v989
        %1195 = vmatpush.bf16.msra.mxu0 %v985
        %1196 = vmatmul.bf16.gmra.mxu0 %v786
        %v1197 = vpop.f32.mrf.mxu0
        %v1198 = vadd.f32 %v778, %v1197
        %v1199 = vpop.f32.mrf.mxu0
        %1200 = vdwg.mxu0
        %1201 = vmatpush.bf16.msra.mxu0 %v1045
        %1202 = vmatpush.bf16.msra.mxu0 %v1041
        %1203 = vmatpush.bf16.msra.mxu0 %v1037
        %1204 = vmatpush.bf16.msra.mxu0 %v1033
        %1205 = vmatpush.bf16.msra.mxu0 %v1029
        %1206 = vmatpush.bf16.msra.mxu0 %v1025
        %1207 = vmatpush.bf16.msra.mxu0 %v1021
        %1208 = vmatpush.bf16.msra.mxu0 %v1017
        %1209 = vmatmul.bf16.gmra.mxu0 %v787
        %v1210 = vpop.f32.mrf.mxu0
        %v1211 = vadd.f32 %v1198, %v1210
        %v1212 = vpop.f32.mrf.mxu0
        %1213 = vdwg.mxu0
        %v1214 = vxor.u32 %v1133, 2147483648
        %v1215 = vmul.f32 %v1214, 1.442695
        %v1216 = vpow.pop %v1215
        %v1217 = vadd.f32 %v1216, 1.0
        %v1218 = vrcp.pop %v1217
        %v1219 = vmul.f32 %v1217, %v1218
        %v1220 = vsub.f32 1.0, %v1219
        %v1221 = vmul.f32 %v1218, %v1220
        %v1222 = vadd.f32 %v1218, %v1221
        %vm1223 = vweird.f32 %v1217
        %vm1224 = vweird.f32 %v1218
        %vm1225 = vmor %vm1223, %vm1224
        %v1226 = vsel %vm1225, %v1218, %v1222
        %v1227 = vand.u32 2147483647, %v1217
        %vm1228 = vcmp.eq.f32.partialorder %v1227, 8.507059e+37
        %v1229 = vand.u32 %v1217, 2147483648
        %v1230 = vor.u32 1.1754944e-38, %v1229
        %v1231 = vsel %vm1228, %v1230, %v1226
        %v1232 = vmul.f32 1.0, %v1231
        %v1233 = vmul.f32 %v167, %v1232
        %v1234 = vxor.u32 %v1159, 2147483648
        %v1235 = vmul.f32 %v1234, 1.442695
        %v1236 = vpow.pop %v1235
        %v1237 = vadd.f32 %v1236, 1.0
        %v1238 = vrcp.pop %v1237
        %v1239 = vmul.f32 %v1237, %v1238
        %v1240 = vsub.f32 1.0, %v1239
        %v1241 = vmul.f32 %v1238, %v1240
        %v1242 = vadd.f32 %v1238, %v1241
        %vm1243 = vweird.f32 %v1237
        %vm1244 = vweird.f32 %v1238
        %vm1245 = vmor %vm1243, %vm1244
        %v1246 = vsel %vm1245, %v1238, %v1242
        %v1247 = vand.u32 2147483647, %v1237
        %vm1248 = vcmp.eq.f32.partialorder %v1247, 8.507059e+37
        %v1249 = vand.u32 %v1237, 2147483648
        %v1250 = vor.u32 1.1754944e-38, %v1249
        %v1251 = vsel %vm1248, %v1250, %v1246
        %v1252 = vmul.f32 1.0, %v1251
        %v1253 = vmul.f32 %v171, %v1252
        %v1254 = vsub.f32 1.0, %v1253
        %v1255 = vmul.f32 %v1254, %v204
        %v1256 = vtanh.pop %v1211
        %v1257 = vmul.f32 %v1253, %v1256
        %v1258 = vadd.f32 %v1255, %v1257
        %v1259 = vpack.c.bf16 %v1258, %v1258
        %v1260 = vld [vmem:[#allocation11] sm:$0xf]
        %v1261 = vld [vmem:[#allocation11 + $0x4] sm:$0xf]
        %v1262 = vld [vmem:[#allocation11 + $0x8] sm:$0xf]
        %v1263 = vld [vmem:[#allocation11 + $0xc] sm:$0xf]
        %v1264 = vld [vmem:[#allocation11 + $0x10] sm:$0xf]
        %v1265 = vld [vmem:[#allocation11 + $0x14] sm:$0xf]
        %v1266 = vld [vmem:[#allocation11 + $0x18] sm:$0xf]
        %v1267 = vld [vmem:[#allocation11 + $0x1c] sm:$0xf]
        %v1268 = vld [vmem:[#allocation11 + $0x20] sm:$0xf]
        %v1269 = vld [vmem:[#allocation11 + $0x24] sm:$0xf]
        %v1270 = vld [vmem:[#allocation11 + $0x28] sm:$0xf]
        %v1271 = vld [vmem:[#allocation11 + $0x2c] sm:$0xf]
        %v1272 = vld [vmem:[#allocation11 + $0x30] sm:$0xf]
        %v1273 = vld [vmem:[#allocation11 + $0x34] sm:$0xf]
        %v1274 = vld [vmem:[#allocation11 + $0x38] sm:$0xf]
        %v1275 = vld [vmem:[#allocation11 + $0x3c] sm:$0xf]
        %v1276 = vld [vmem:[%s9] sm:$0x1]
        %v1278 = vperm.slane %v1276, 0
        %v1296 = vunpack.c.l.b16 %v1260
        %v1297 = vunpack.c.l.b16 %v1261
        %v1298 = vunpack.c.l.b16 %v1262
        %v1299 = vunpack.c.l.b16 %v1263
        %v1300 = vunpack.c.l.b16 %v1264
        %v1301 = vunpack.c.l.b16 %v1265
        %v1302 = vunpack.c.l.b16 %v1266
        %v1303 = vunpack.c.l.b16 %v1267
        %v1304 = vunpack.c.l.b16 %v1268
        %v1305 = vunpack.c.l.b16 %v1269
        %v1306 = vunpack.c.l.b16 %v1270
        %v1307 = vunpack.c.l.b16 %v1271
        %v1308 = vunpack.c.l.b16 %v1272
        %v1309 = vunpack.c.l.b16 %v1273
        %v1310 = vunpack.c.l.b16 %v1274
        %v1311 = vunpack.c.l.b16 %v1275
        %v1312 = vpack.c.b16 %v1297, %v1296
        %v1313 = vpack.c.b16 %v1299, %v1298
        %v1314 = vpack.c.b16 %v1301, %v1300
        %v1315 = vpack.c.b16 %v1303, %v1302
        %v1316 = vpack.c.b16 %v1305, %v1304
        %v1317 = vpack.c.b16 %v1307, %v1306
        %v1318 = vpack.c.b16 %v1309, %v1308
        %v1319 = vpack.c.b16 %v1311, %v1310
        %1328 = vmatpush.bf16.msra.mxu0 %v1319
        %1329 = vmatpush.bf16.msra.mxu0 %v1318
        %1330 = vmatpush.bf16.msra.mxu0 %v1317
        %1331 = vmatpush.bf16.msra.mxu0 %v1316
        %1332 = vmatpush.bf16.msra.mxu0 %v1315
        %1333 = vmatpush.bf16.msra.mxu0 %v1314
        %1334 = vmatpush.bf16.msra.mxu0 %v1313
        %1335 = vmatpush.bf16.msra.mxu0 %v1312
        %1336 = vmatmul.bf16.gmra.mxu0 %v1259
        %v1337 = vpop.f32.mrf.mxu0
        %v1338 = vadd.f32 %v1278, %v1337
        %v1339 = vpop.f32.mrf.mxu0
        %1340 = vdwg.mxu0
        %v1341 = vsub.f32 1.0, %v1233
        %v1342 = vmul.f32 %v1341, %v203
        %v1343 = vadd.f32 %v1338, %v1185
        %v1344 = vtanh.pop %v1343
        %v1345 = vmul.f32 %v1233, %v1344
        %v1346 = vadd.f32 %v1342, %v1345
        %v1347 = vpack.c.bf16 %v1346, %v1346
        %v1348 = vld [vmem:[#allocation13] sm:$0xf]
        %v1349 = vld [vmem:[#allocation13 + $0x4] sm:$0xf]
        %v1350 = vld [vmem:[#allocation13 + $0x8] sm:$0xf]
        %v1351 = vld [vmem:[#allocation13 + $0xc] sm:$0xf]
        %v1352 = vld [vmem:[#allocation13 + $0x10] sm:$0xf]
        %v1353 = vld [vmem:[#allocation13 + $0x14] sm:$0xf]
        %v1354 = vld [vmem:[#allocation13 + $0x18] sm:$0xf]
        %v1355 = vld [vmem:[#allocation13 + $0x1c] sm:$0xf]
        %v1356 = vld [vmem:[#allocation13 + $0x20] sm:$0xf]
        %v1357 = vld [vmem:[#allocation13 + $0x24] sm:$0xf]
        %v1358 = vld [vmem:[#allocation13 + $0x28] sm:$0xf]
        %v1359 = vld [vmem:[#allocation13 + $0x2c] sm:$0xf]
        %v1360 = vld [vmem:[#allocation13 + $0x30] sm:$0xf]
        %v1361 = vld [vmem:[#allocation13 + $0x34] sm:$0xf]
        %v1362 = vld [vmem:[#allocation13 + $0x38] sm:$0xf]
        %v1363 = vld [vmem:[#allocation13 + $0x3c] sm:$0xf]
        %v1364 = vld [vmem:[%s11] sm:$0x1]
        %v1366 = vperm.slane %v1364, 0
        %v1384 = vunpack.c.l.b16 %v1348
        %v1385 = vunpack.c.l.b16 %v1349
        %v1386 = vunpack.c.l.b16 %v1350
        %v1387 = vunpack.c.l.b16 %v1351
        %v1388 = vunpack.c.l.b16 %v1352
        %v1389 = vunpack.c.l.b16 %v1353
        %v1390 = vunpack.c.l.b16 %v1354
        %v1391 = vunpack.c.l.b16 %v1355
        %v1392 = vunpack.c.l.b16 %v1356
        %v1393 = vunpack.c.l.b16 %v1357
        %v1394 = vunpack.c.l.b16 %v1358
        %v1395 = vunpack.c.l.b16 %v1359
        %v1396 = vunpack.c.l.b16 %v1360
        %v1397 = vunpack.c.l.b16 %v1361
        %v1398 = vunpack.c.l.b16 %v1362
        %v1399 = vunpack.c.l.b16 %v1363
        %v1400 = vpack.c.b16 %v1385, %v1384
        %v1401 = vpack.c.b16 %v1387, %v1386
        %v1402 = vpack.c.b16 %v1389, %v1388
        %v1403 = vpack.c.b16 %v1391, %v1390
        %v1404 = vpack.c.b16 %v1393, %v1392
        %v1405 = vpack.c.b16 %v1395, %v1394
        %v1406 = vpack.c.b16 %v1397, %v1396
        %v1407 = vpack.c.b16 %v1399, %v1398
        %1416 = vmatpush.bf16.msra.mxu0 %v1407
        %1417 = vmatpush.bf16.msra.mxu0 %v1406
        %1418 = vmatpush.bf16.msra.mxu0 %v1405
        %1419 = vmatpush.bf16.msra.mxu0 %v1404
        %1420 = vmatpush.bf16.msra.mxu0 %v1403
        %1421 = vmatpush.bf16.msra.mxu0 %v1402
        %1422 = vmatpush.bf16.msra.mxu0 %v1401
        %1423 = vmatpush.bf16.msra.mxu0 %v1400
        %1424 = vmatmul.bf16.gmra.mxu0 %v1347
        %v1425 = vpop.f32.mrf.mxu0
        %v1426 = vadd.f32 %v1366, %v1425
        %v1427 = vpop.f32.mrf.mxu0
        %1428 = vdwg.mxu0
        %v1429 = vmul.f32 %v177, %v706
        %v1430 = vadd.f32 %v1346, %v1429
        %v1431 = vmul.f32 %v177, %v707
        %v1432 = vadd.f32 %v1258, %v1431
        %v1433 = vpack.c.bf16 %v1426, %v1426
        %1434 = vst [vmem:[#allocation4] sm:$0xf] %v1433
        %v1435 = vpack.c.bf16 %v1430, %v1430
        %1436 = vst [vmem:[#allocation4 + $0x4] sm:$0xf] %v1435
      $region77: #{lemode2_forward.1} parent=69 // loop_footer
        %s200 = sadd.s32 %s198, 1
      $region78: #{lemode2_forward.1} parent=69 // loop_footer_branch
        %197 = sbr.rel target = $region74
      $region79: #{lemode2_forward.1} parent=69 // loop_exit
        _
      %1437 = vst [vmem:[#allocation2] sm:$0xff] %v203
      %1438 = vst [vmem:[#allocation3] sm:$0xff] %v204
      %v1439 = vpack.c.bf16 %v203, %v203
      %v1440 = vld [vmem:[#allocation13] sm:$0xf]
      %v1441 = vld [vmem:[#allocation13 + $0x4] sm:$0xf]
      %v1442 = vld [vmem:[#allocation13 + $0x8] sm:$0xf]
      %v1443 = vld [vmem:[#allocation13 + $0xc] sm:$0xf]
      %v1444 = vld [vmem:[#allocation13 + $0x10] sm:$0xf]
      %v1445 = vld [vmem:[#allocation13 + $0x14] sm:$0xf]
      %v1446 = vld [vmem:[#allocation13 + $0x18] sm:$0xf]
      %v1447 = vld [vmem:[#allocation13 + $0x1c] sm:$0xf]
      %v1448 = vld [vmem:[#allocation13 + $0x20] sm:$0xf]
      %v1449 = vld [vmem:[#allocation13 + $0x24] sm:$0xf]
      %v1450 = vld [vmem:[#allocation13 + $0x28] sm:$0xf]
      %v1451 = vld [vmem:[#allocation13 + $0x2c] sm:$0xf]
      %v1452 = vld [vmem:[#allocation13 + $0x30] sm:$0xf]
      %v1453 = vld [vmem:[#allocation13 + $0x34] sm:$0xf]
      %v1454 = vld [vmem:[#allocation13 + $0x38] sm:$0xf]
      %v1455 = vld [vmem:[#allocation13 + $0x3c] sm:$0xf]
      %v1456 = vld [vmem:[%s11] sm:$0x1]
      %v1458 = vperm.slane %v1456, 0
      %v1476 = vunpack.c.l.b16 %v1440
      %v1477 = vunpack.c.l.b16 %v1441
      %v1478 = vunpack.c.l.b16 %v1442
      %v1479 = vunpack.c.l.b16 %v1443
      %v1480 = vunpack.c.l.b16 %v1444
      %v1481 = vunpack.c.l.b16 %v1445
      %v1482 = vunpack.c.l.b16 %v1446
      %v1483 = vunpack.c.l.b16 %v1447
      %v1484 = vunpack.c.l.b16 %v1448
      %v1485 = vunpack.c.l.b16 %v1449
      %v1486 = vunpack.c.l.b16 %v1450
      %v1487 = vunpack.c.l.b16 %v1451
      %v1488 = vunpack.c.l.b16 %v1452
      %v1489 = vunpack.c.l.b16 %v1453
      %v1490 = vunpack.c.l.b16 %v1454
      %v1491 = vunpack.c.l.b16 %v1455
      %v1492 = vpack.c.b16 %v1477, %v1476
      %v1493 = vpack.c.b16 %v1479, %v1478
      %v1494 = vpack.c.b16 %v1481, %v1480
      %v1495 = vpack.c.b16 %v1483, %v1482
      %v1496 = vpack.c.b16 %v1485, %v1484
      %v1497 = vpack.c.b16 %v1487, %v1486
      %v1498 = vpack.c.b16 %v1489, %v1488
      %v1499 = vpack.c.b16 %v1491, %v1490
      %1508 = vmatpush.bf16.msra.mxu0 %v1499
      %1509 = vmatpush.bf16.msra.mxu0 %v1498
      %1510 = vmatpush.bf16.msra.mxu0 %v1497
      %1511 = vmatpush.bf16.msra.mxu0 %v1496
      %1512 = vmatpush.bf16.msra.mxu0 %v1495
      %1513 = vmatpush.bf16.msra.mxu0 %v1494
      %1514 = vmatpush.bf16.msra.mxu0 %v1493
      %1515 = vmatpush.bf16.msra.mxu0 %v1492
      %1516 = vmatmul.bf16.gmra.mxu0 %v1439
      %v1517 = vpop.f32.mrf.mxu0
      %v1518 = vadd.f32 %v1458, %v1517
      %v1519 = vpop.f32.mrf.mxu0
      %1520 = vdwg.mxu0
      %s1521 = scalar_lea.vmem [#allocation14], %s125
      %1522 = vst [vmem:[%s1521] sm:$0xff] %v1518
    $region70: #{lemode2_forward.1} parent=1 // loop_footer
      %s122 = sadd.s32 1, %s118
    $region71: #{lemode2_forward.1} parent=1 // loop_footer_branch
      %117 = sbr.rel target = $region67
    $region72: #{lemode2_forward.1} parent=1 // loop_exit
      _
    // Predicated region
    $region80: #{lemode2_forward.1} parent=1 // pred_check
      _
    $region81: #{lemode2_forward.1} parent=1 // pred_check_branch
      %1524 = sbr.rel (0) target = $region83
    $region82: #{lemode2_forward.1} parent=1 // pred_region
      %1526 = vsyncadd [#allocation10], 0
      %s1527 = sshll.u32 [#allocation14], 4
      %s1528 = int_to_ptr.vmem [resolvable:$true] %s1527
      %s1529 = sshll.u32 %s14, 4
      %s1530 = int_to_ptr.hbm [resolvable:$true] %s1529
      %1535 = dma.vmem_to_hbm [thread:$0]  %s1528, 512, %s1530, [#allocation10], 128, 128, 8
    $region83: #{lemode2_forward.1} parent=1 // pred_fallthru
      _
    // Predicated region
    $region84: #{lemode2_forward.1} parent=1 // pred_check
      _
    $region85: #{lemode2_forward.1} parent=1 // pred_check_branch
      %1537 = sbr.rel (0) target = $region87
    $region86: #{lemode2_forward.1} parent=1 // pred_region
      %1539 = dma.done [#allocation10], 512
    $region87: #{lemode2_forward.1} parent=1 // pred_fallthru
      _
    %1540 = vsyncpa [#allocation9], 1
    %1541 = vsyncpa [#allocation12], 1
    %1542 = vsyncpa [#allocation10], 1

</llo_original>
